<compile_context>
chip_gen: v6e
topology: v6e:2x2x1
jax: 0.10.0
libtpu: 0.0.40
codegen_flags: <defaults>
</compile_context>

<pallas_src>
import functools
import math

import jax
import jax.numpy as jnp
from jax.experimental import pallas as pl
from jax.experimental.pallas import tpu as pltpu

_BN_EPS = 1e-5
_VMEM_LIMIT = 32 * 1024 * 1024


def _round_up(x, m):
    return ((x + m - 1) // m) * m


def _pick_tk(kp):
    for tk in (512, 256, 128):
        if kp % tk == 0:
            return tk
    return kp


def _pick_tn(np_):
    # 256-wide output tiles fill the v6e/v7x 256x256 MXU and halve redundant
    # re-reads of the x tile; harmless on v5e (128-wide MXU).
    return 256 if np_ % 256 == 0 else 128


def _tile_rows(m):
    """(row_tile, padded_rows) for the pixel dimension of a matmul."""
    if m % 512 == 0:
        return 512, m
    if m % 256 == 0:
        return 256, m
    if m >= 1024:
        return 512, _round_up(m, 512)
    if m >= 256:
        return 256, _round_up(m, 256)
    mp = _round_up(m, 8)
    return mp, mp


# ---------------------------------------------------------------------------
# Pallas kernels
# ---------------------------------------------------------------------------

def _mm_stats_kernel(*refs, has_affine, in_relu, tm, valid_rows):
    """bf16 x @ bf16 w, fp32 accumulate; fused per-channel sum / sum-of-squares.

    Optionally applies the producer's BatchNorm scale/shift (+ReLU) to the x
    tile in-register (so the producer only ever stores pre-BN activations).
    grid = (M_tiles, N_tiles, K_tiles); stats are per-M-tile partials so both
    non-K axes are 'parallel' (keeps both v7x TensorCores busy).
    """
    if has_affine:
        x_ref, w_ref, sc_ref, sh_ref, o_ref, s_ref, q_ref, acc_ref = refs
    else:
        x_ref, w_ref, o_ref, s_ref, q_ref, acc_ref = refs
        sc_ref = sh_ref = None
    k = pl.program_id(2)
    nk = pl.num_programs(2)

    @pl.when(k == 0)
    def _():
        acc_ref[...] = jnp.zeros_like(acc_ref)

    x = x_ref[...]
    if has_affine:
        xf = x.astype(jnp.float32) * sc_ref[...] + sh_ref[...]
        if in_relu:
            xf = jnp.maximum(xf, 0.0)
        if valid_rows is not None:
            # re-zero the zero-padded rows (the BN shift would otherwise leak
            # into this conv's own batch statistics).
            row = (pl.program_id(0) * tm
                   + jax.lax.broadcasted_iota(jnp.int32, xf.shape, 0))
            xf = jnp.where(row < valid_rows, xf, 0.0)
        x = xf.astype(jnp.bfloat16)
    acc_ref[...] += jnp.dot(x, w_ref[...], preferred_element_type=jnp.float32)

    @pl.when(k == nk - 1)
    def _():
        acc = acc_ref[...]
        o_ref[...] = acc.astype(o_ref.dtype)
        s_ref[...] = jnp.sum(acc, axis=0, keepdims=True)
        q_ref[...] = jnp.sum(acc * acc, axis=0, keepdims=True)


def _matmul_bn_stats(x, w, in_scale, in_shift, *, tm, tn, tk,
                     in_relu=False, valid_rows=None):
    mp, kp = x.shape
    _, np_ = w.shape
    ni = mp // tm
    has_affine = in_scale is not None
    in_specs = [pl.BlockSpec((tm, tk), lambda i, j, k: (i, k)),
                pl.BlockSpec((tk, tn), lambda i, j, k: (k, j))]
    args = [x, w]
    if has_affine:
        in_specs += [pl.BlockSpec((1, tk), lambda i, j, k: (0, k)),
                     pl.BlockSpec((1, tk), lambda i, j, k: (0, k))]
        args += [in_scale.reshape(1, kp), in_shift.reshape(1, kp)]
    # TODO(synk): if profiling shows exposed weight DMA at tk=128, add
    # pipeline_mode=pl.Buffered(3) on the w BlockSpec.
    return pl.pallas_call(
        functools.partial(_mm_stats_kernel, has_affine=has_affine,
                          in_relu=in_relu, tm=tm, valid_rows=valid_rows),
        out_shape=(jax.ShapeDtypeStruct((mp, np_), jnp.bfloat16),
                   jax.ShapeDtypeStruct((ni, np_), jnp.float32),
                   jax.ShapeDtypeStruct((ni, np_), jnp.float32)),
        grid=(ni, np_ // tn, kp // tk),
        in_specs=in_specs,
        out_specs=(pl.BlockSpec((tm, tn), lambda i, j, k: (i, j)),
                   pl.BlockSpec((1, tn), lambda i, j, k: (i, j)),
                   pl.BlockSpec((1, tn), lambda i, j, k: (i, j))),
        scratch_shapes=[pltpu.VMEM((tm, tn), jnp.float32)],
        compiler_params=pltpu.CompilerParams(
            dimension_semantics=("parallel", "parallel", "arbitrary"),
            vmem_limit_bytes=_VMEM_LIMIT),
    )(*args)


def _conv3x3_kernel(*refs, ho, wo, pad, has_affine, in_relu):
    """Direct 3x3 stride-1 conv: accumulate the 9 taps from a VMEM-resident
    padded image slab (no im2col materialization in HBM), with fused BN
    batch-stats epilogue and optional fused producer-BN(+ReLU) prologue."""
    if has_affine:
        x_ref, w_ref, sc_ref, sh_ref, o_ref, s_ref, q_ref, acc_ref = refs
    else:
        x_ref, w_ref, o_ref, s_ref, q_ref, acc_ref = refs
        sc_ref = sh_ref = None
    k = pl.program_id(2)
    nk = pl.num_programs(2)

    @pl.when(k == 0)
    def _():
        acc_ref[...] = jnp.zeros_like(acc_ref)

    x = x_ref[...]                                  # (1, Hp, Wp, tk) bf16
    hp, wp = x.shape[1], x.shape[2]
    if has_affine:
        sc = sc_ref[...].reshape(1, 1, 1, -1)
        sh = sh_ref[...].reshape(1, 1, 1, -1)
        xf = x.astype(jnp.float32) * sc + sh
        if in_relu:
            xf = jnp.maximum(xf, 0.0)
        # the spatial halo of the conv padding must stay exactly zero after
        # the affine (relu(shift) would otherwise bleed into border pixels).
        ih = jax.lax.broadcasted_iota(jnp.int32, xf.shape, 1)
        iw = jax.lax.broadcasted_iota(jnp.int32, xf.shape, 2)
        inside = ((ih >= pad) & (ih < hp - pad) &
                  (iw >= pad) & (iw < wp - pad))
        xf = jnp.where(inside, xf, 0.0)
        x = xf.astype(jnp.bfloat16)

    tk = x.shape[-1]
    for t in range(9):
        di, dj = t // 3, t % 3
        win = x[0, di:di + ho, dj:dj + wo, :].reshape(ho * wo, tk)
        acc_ref[...] += jnp.dot(win, w_ref[t],
                                preferred_element_type=jnp.float32)

    @pl.when(k == nk - 1)
    def _():
        acc = acc_ref[...]
        o_ref[...] = acc[None].astype(o_ref.dtype)
        s_ref[...] = jnp.sum(acc, axis=0, keepdims=True)
        q_ref[...] = jnp.sum(acc * acc, axis=0, keepdims=True)


def _conv3x3_call(xp, w_taps, in_scale, in_shift, *, ho, wo, in_relu, tn, tk):
    n, hp, wp, cp = xp.shape
    cop = w_taps.shape[2]
    m_img = ho * wo
    has_affine = in_scale is not None
    in_specs = [pl.BlockSpec((1, hp, wp, tk), lambda b, j, k: (b, 0, 0, k)),
                pl.BlockSpec((9, tk, tn), lambda b, j, k: (0, k, j))]
    args = [xp, w_taps]
    if has_affine:
        in_specs += [pl.BlockSpec((1, tk), lambda b, j, k: (0, k)),
                     pl.BlockSpec((1, tk), lambda b, j, k: (0, k))]
        args += [in_scale.reshape(1, cp), in_shift.reshape(1, cp)]
    return pl.pallas_call(
        functools.partial(_conv3x3_kernel, ho=ho, wo=wo, pad=1,
                          has_affine=has_affine, in_relu=in_relu),
        out_shape=(jax.ShapeDtypeStruct((n, m_img, cop), jnp.bfloat16),
                   jax.ShapeDtypeStruct((n, cop), jnp.float32),
                   jax.ShapeDtypeStruct((n, cop), jnp.float32)),
        grid=(n, cop // tn, cp // tk),
        in_specs=in_specs,
        out_specs=(pl.BlockSpec((1, m_img, tn), lambda b, j, k: (b, 0, j)),
                   pl.BlockSpec((1, tn), lambda b, j, k: (b, j)),
                   pl.BlockSpec((1, tn), lambda b, j, k: (b, j))),
        scratch_shapes=[pltpu.VMEM((m_img, tn), jnp.float32)],
        compiler_params=pltpu.CompilerParams(
            dimension_semantics=("parallel", "parallel", "arbitrary"),
            vmem_limit_bytes=_VMEM_LIMIT),
    )(*args)


def _mm_bias_kernel(*refs, has_affine, in_relu, relu):
    if has_affine:
        x_ref, w_ref, sc_ref, sh_ref, b_ref, o_ref, acc_ref = refs
    else:
        x_ref, w_ref, b_ref, o_ref, acc_ref = refs
        sc_ref = sh_ref = None
    k = pl.program_id(2)

    @pl.when(k == 0)
    def _():
        acc_ref[...] = jnp.zeros_like(acc_ref)

    x = x_ref[...]
    if has_affine:
        xf = x.astype(jnp.float32) * sc_ref[...] + sh_ref[...]
        if in_relu:
            xf = jnp.maximum(xf, 0.0)
        x = xf.astype(jnp.bfloat16)
    acc_ref[...] += jnp.dot(x, w_ref[...], preferred_element_type=jnp.float32)

    @pl.when(k == pl.num_programs(2) - 1)
    def _():
        y = acc_ref[...] + b_ref[...]
        if relu:
            y = jnp.maximum(y, 0.0)
        o_ref[...] = y.astype(o_ref.dtype)


def _scale_shift_kernel(x_ref, s_ref, b_ref, o_ref, *, relu):
    y = x_ref[...].astype(jnp.float32) * s_ref[...] + b_ref[...]
    if relu:
        y = jnp.maximum(y, 0.0)
    o_ref[...] = y.astype(o_ref.dtype)


def _res_mask_relu_kernel(o_ref, r_ref, osc_ref, osh_ref, rsc_ref, rsh_ref,
                          w4_ref, y_ref, *, hw):
    """relu(bn3(out) + bn_r(residual) * hard_mask(bn_r(residual))).

    The per-image threshold (mean over pixels of sigmoid(conv4 channel-sum))
    is computed inside the kernel, so the residual is read exactly once and
    the channel-sum is reused for both threshold and mask.
    """
    o = o_ref[...].astype(jnp.float32)                         # (1, HW, C)
    r = r_ref[...].astype(jnp.float32)
    on = o * osc_ref[...] + osh_ref[...]
    rn = r * rsc_ref[...] + rsh_ref[...]
    rep = jnp.sum(rn * w4_ref[...], axis=-1, keepdims=True)    # (1, HW, 1)
    gate = 1.0 / (1.0 + jnp.exp(-rep))                         # sigmoid
    thr = jnp.sum(gate, axis=1, keepdims=True) * (1.0 / hw)    # (1, 1, 1)
    mask = jnp.where(gate * gate > thr, 1.0, 0.0)
    y_ref[...] = jnp.maximum(on + rn * mask, 0.0).astype(y_ref.dtype)


# ---------------------------------------------------------------------------
# Fused NN building blocks (NHWC bf16 activations, channel-padded to 128)
# ---------------------------------------------------------------------------

def _bn_scale_shift(ssum, ssq, m, gamma, beta, cop):
    mean = ssum / m
    # TODO(synk): single-pass E[x^2]-E[x]^2 in fp32 can lose precision vs
    # torch's two-pass variance for large-magnitude activations.
    var = jnp.maximum(ssq / m - mean * mean, 0.0)
    scale = gamma * jax.lax.rsqrt(var + _BN_EPS)
    shift = beta - mean * scale
    c = gamma.shape[0]
    if cop != c:
        scale = jnp.pad(scale, (0, cop - c), constant_values=1.0)
        shift = jnp.pad(shift, (0, cop - c))
    return scale, shift


def _pad_vec(v, kp, fill):
    if v.shape[0] == kp:
        return v
    return jnp.pad(v, (0, kp - v.shape[0]), constant_values=fill)


@functools.partial(jax.jit, static_argnames=("stride", "in_relu"))
def _conv1x1_unit(x, in_scale, in_shift, wmat, gamma, beta, *, stride, in_relu):
    """1x1 conv (plain matmul) with fused producer-BN(+ReLU) prologue and
    fused batch-stat accumulation for this conv's own BN."""
    x = x.astype(jnp.bfloat16)
    if stride > 1:
        x = x[:, ::stride, ::stride, :]
    n, h, w, c = x.shape
    m = n * h * w
    kp, np_ = wmat.shape
    c_out = gamma.shape[0]
    xm = x.reshape(m, c)
    tm, mp = _tile_rows(m)
    if mp != m or kp != c:
        xm = jnp.pad(xm, ((0, mp - m), (0, kp - c)))
    sc = sh = None
    valid_rows = None
    if in_scale is not None:
        sc = _pad_vec(in_scale, kp, 1.0)
        sh = _pad_vec(in_shift, kp, 0.0)
        if mp != m:
            valid_rows = m
    y, ps, pq = _matmul_bn_stats(xm, wmat, sc, sh, tm=tm, tn=_pick_tn(np_),
                                 tk=_pick_tk(kp), in_relu=in_relu,
                                 valid_rows=valid_rows)
    ssum = jnp.sum(ps, axis=0)[:c_out]
    ssq = jnp.sum(pq, axis=0)[:c_out]
    scale, shift = _bn_scale_shift(ssum, ssq, m, gamma, beta, np_)
    return y[:m].reshape(n, h, w, np_), scale, shift


@functools.partial(jax.jit, static_argnames=("in_relu",))
def _conv3x3_unit(x, in_scale, in_shift, w_taps, gamma, beta, *, in_relu):
    """3x3 stride-1 conv via in-kernel tap accumulation (no im2col in HBM)."""
    x = x.astype(jnp.bfloat16)
    n, h, w, c = x.shape
    _, cp, cop = w_taps.shape
    c_out = gamma.shape[0]
    xp = jnp.pad(x, ((0, 0), (1, 1), (1, 1), (0, cp - c)))
    sc = sh = None
    if in_scale is not None:
        sc = _pad_vec(in_scale, cp, 1.0)
        sh = _pad_vec(in_shift, cp, 0.0)
    y, ps, pq = _conv3x3_call(xp, w_taps, sc, sh, ho=h, wo=w,
                              in_relu=in_relu, tn=_pick_tn(cop),
                              tk=_pick_tk(cp))
    m = n * h * w
    ssum = jnp.sum(ps, axis=0)[:c_out]
    ssq = jnp.sum(pq, axis=0)[:c_out]
    scale, shift = _bn_scale_shift(ssum, ssq, m, gamma, beta, cop)
    return y.reshape(n, h, w, cop), scale, shift


@functools.partial(jax.jit, static_argnames=("kh", "kw", "stride", "padding"))
def _conv_im2col_unit(x, wmat, gamma, beta, *, kh, kw, stride, padding):
    """Fallback conv path (7x7 stem / stride-2 3x3): JAX-side im2col feeding
    the stats matmul.  Input must already be 'finished' (no pending BN).
    Channels are pre-padded by the caller, so only row padding remains."""
    x = x.astype(jnp.bfloat16)
    n, h, w, c = x.shape
    c_out = gamma.shape[0]
    ho = (h + 2 * padding - kh) // stride + 1
    wo = (w + 2 * padding - kw) // stride + 1
    m = n * ho * wo
    xp = jnp.pad(x, ((0, 0), (padding, padding), (padding, padding), (0, 0)))
    cols = [xp[:, di:di + stride * ho:stride, dj:dj + stride * wo:stride, :]
            for di in range(kh) for dj in range(kw)]
    patches = jnp.concatenate(cols, axis=-1).reshape(m, kh * kw * c)
    kp, np_ = wmat.shape
    tm, mp = _tile_rows(m)
    if mp != m or kp != patches.shape[1]:
        patches = jnp.pad(patches, ((0, mp - m), (0, kp - patches.shape[1])))
    y, ps, pq = _matmul_bn_stats(patches, wmat, None, None, tm=tm,
                                 tn=_pick_tn(np_), tk=_pick_tk(kp))
    ssum = jnp.sum(ps, axis=0)[:c_out]
    ssq = jnp.sum(pq, axis=0)[:c_out]
    scale, shift = _bn_scale_shift(ssum, ssq, m, gamma, beta, np_)
    return y[:m].reshape(n, ho, wo, np_), scale, shift


@functools.partial(jax.jit, static_argnames=("relu",))
def _scale_shift_unit(x, scale, shift, *, relu):
    """Standalone BN apply (+ReLU) — only used where no consumer can fuse it."""
    n, h, w, c = x.shape
    m = n * h * w
    xm = x.astype(jnp.bfloat16).reshape(m, c)
    mp = _round_up(m, 8)
    if mp != m:
        xm = jnp.pad(xm, ((0, mp - m), (0, 0)))
    tr = mp
    for t in (1024, 512, 256):
        if mp % t == 0:
            tr = t
            break
    y = pl.pallas_call(
        functools.partial(_scale_shift_kernel, relu=relu),
        out_shape=jax.ShapeDtypeStruct((mp, c), jnp.bfloat16),
        grid=(mp // tr,),
        in_specs=[pl.BlockSpec((tr, c), lambda i: (i, 0)),
                  pl.BlockSpec((1, c), lambda i: (0, 0)),
                  pl.BlockSpec((1, c), lambda i: (0, 0))],
        out_specs=pl.BlockSpec((tr, c), lambda i: (i, 0)),
        compiler_params=pltpu.CompilerParams(
            dimension_semantics=("parallel",),
            vmem_limit_bytes=_VMEM_LIMIT),
    )(xm, scale.reshape(1, c), shift.reshape(1, c))
    return y[:m].reshape(n, h, w, c)


@functools.partial(jax.jit, static_argnames=("relu", "in_relu", "n_out"))
def _fc_unit(x, wmat, bias, in_scale, in_shift, *, relu, in_relu, n_out):
    """Linear layer: bf16 MXU matmul with fused input-BN(+ReLU) prologue and
    bias(+ReLU) epilogue."""
    m, kin = x.shape
    kp, np_ = wmat.shape
    tm, mp = _tile_rows(m)
    xm = x.astype(jnp.bfloat16)
    if mp != m or kp != kin:
        xm = jnp.pad(xm, ((0, mp - m), (0, kp - kin)))
    tn, tk = _pick_tn(np_), _pick_tk(kp)
    has_affine = in_scale is not None
    in_specs = [pl.BlockSpec((tm, tk), lambda i, j, k: (i, k)),
                pl.BlockSpec((tk, tn), lambda i, j, k: (k, j))]
    args = [xm, wmat]
    if has_affine:
        in_specs += [pl.BlockSpec((1, tk), lambda i, j, k: (0, k)),
                     pl.BlockSpec((1, tk), lambda i, j, k: (0, k))]
        args += [_pad_vec(in_scale, kp, 1.0).reshape(1, kp),
                 _pad_vec(in_shift, kp, 0.0).reshape(1, kp)]
    in_specs += [pl.BlockSpec((1, tn), lambda i, j, k: (0, j))]
    args += [bias]
    y = pl.pallas_call(
        functools.partial(_mm_bias_kernel, has_affine=has_affine,
                          in_relu=in_relu, relu=relu),
        out_shape=jax.ShapeDtypeStruct((mp, np_), jnp.float32),
        grid=(mp // tm, np_ // tn, kp // tk),
        in_specs=in_specs,
        out_specs=pl.BlockSpec((tm, tn), lambda i, j, k: (i, j)),
        scratch_shapes=[pltpu.VMEM((tm, tn), jnp.float32)],
        compiler_params=pltpu.CompilerParams(
            dimension_semantics=("parallel", "parallel", "arbitrary"),
            vmem_limit_bytes=_VMEM_LIMIT),
    )(*args)
    return y[:m, :n_out]


@jax.jit
def _residual_unit(o_pre, osc, osh, r, rsc, rsh, w4s):
    """Fused Bottleneck tail: BN(conv3 out), BN(residual), attention mask with
    in-kernel per-image threshold, out + residual*mask, ReLU."""
    n, h, w, c = o_pre.shape
    hw = h * w
    o3 = o_pre.reshape(n, hw, c)
    r3 = r.astype(jnp.bfloat16).reshape(n, hw, c)
    vec = lambda v: v.reshape(1, 1, c)
    # TODO(synk): at very large HW this whole-image block should be hw-tiled
    # with a first-pass threshold reduction (fine at ResNet feature-map sizes).
    y = pl.pallas_call(
        functools.partial(_res_mask_relu_kernel, hw=hw),
        out_shape=jax.ShapeDtypeStruct((n, hw, c), jnp.bfloat16),
        grid=(n,),
        in_specs=[pl.BlockSpec((1, hw, c), lambda b: (b, 0, 0)),
                  pl.BlockSpec((1, hw, c), lambda b: (b, 0, 0)),
                  pl.BlockSpec((1, 1, c), lambda b: (0, 0, 0)),
                  pl.BlockSpec((1, 1, c), lambda b: (0, 0, 0)),
                  pl.BlockSpec((1, 1, c), lambda b: (0, 0, 0)),
                  pl.BlockSpec((1, 1, c), lambda b: (0, 0, 0)),
                  pl.BlockSpec((1, 1, c), lambda b: (0, 0, 0))],
        out_specs=pl.BlockSpec((1, hw, c), lambda b: (b, 0, 0)),
        compiler_params=pltpu.CompilerParams(
            dimension_semantics=("parallel",),
            vmem_limit_bytes=_VMEM_LIMIT),
    )(o3, r3, vec(osc), vec(osh), vec(rsc), vec(rsh), vec(w4s))
    return y.reshape(n, h, w, c)


def _max_pool_3x3_s2_p1(x):
    # TODO(synk): MaxPool2d via lax.reduce_window (no clean rectangular-tile
    # Pallas equivalent at this scale).
    return jax.lax.reduce_window(
        x, jnp.array(-jnp.inf, x.dtype), jax.lax.max,
        window_dimensions=(1, 3, 3, 1), window_strides=(1, 2, 2, 1),
        padding=((0, 0), (1, 1), (1, 1), (0, 0)))


# ---------------------------------------------------------------------------
# Activation with a pending (BN scale/shift [+ReLU]) fused into its consumer
# ---------------------------------------------------------------------------

class _Act:
    __slots__ = ("x", "scale", "shift", "relu")

    def __init__(self, x, scale=None, shift=None, relu=False):
        self.x = x
        self.scale = scale
        self.shift = shift
        self.relu = relu


def _materialize(act):
    if act.scale is None:
        return act.x
    return _scale_shift_unit(act.x, act.scale, act.shift, relu=act.relu)


def _conv1x1(act, wmat, gamma, beta, *, stride=1):
    return _conv1x1_unit(act.x, act.scale, act.shift, wmat, gamma, beta,
                         stride=stride, in_relu=act.relu)


def _conv3x3(act, w_taps, gamma, beta, *, stride=1):
    n, h, w, c = act.x.shape
    taps, cp, cop = w_taps.shape
    if stride == 1:
        tk, tn = _pick_tk(cp), _pick_tn(cop)
        hp, wp = h + 2, w + 2
        m_img = h * w
        vmem_est = (2 * hp * wp * tk * 2 + 2 * taps * tk * tn * 2
                    + m_img * tn * 4 + 2 * m_img * tn * 2)
        if vmem_est <= 20 * 1024 * 1024:
            return _conv3x3_unit(act.x, act.scale, act.shift, w_taps,
                                 gamma, beta, in_relu=act.relu)
    # stride-2 (or oversized slab) fallback: materialize pending BN, im2col.
    xf = _materialize(act)
    wmat = w_taps.reshape(taps * cp, cop)
    return _conv_im2col_unit(xf, wmat, gamma, beta, kh=3, kw=3,
                             stride=stride, padding=1)


# ---------------------------------------------------------------------------
# Parameter construction (deterministic; weights pre-transposed/padded/bf16)
# ---------------------------------------------------------------------------

class _KeyGen:
    def __init__(self, seed):
        self._base = jax.random.PRNGKey(seed)
        self._n = 0

    def next(self):
        self._n += 1
        return jax.random.fold_in(self._base, self._n)


def _conv_weight(kg, out_c, in_c, kh, kw):
    std = math.sqrt(2.0 / (out_c * kh * kw))   # kaiming_normal_(fan_out, relu)
    return std * jax.random.normal(kg.next(), (out_c, in_c, kh, kw), jnp.float32)


def _linear(kg, in_f, out_f, w_scale=None):
    bound = 1.0 / math.sqrt(in_f)
    w = jax.random.uniform(kg.next(), (in_f, out_f), jnp.float32, -bound, bound)
    b = jax.random.uniform(kg.next(), (out_f,), jnp.float32, -bound, bound)
    if w_scale is not None:
        w = w * w_scale
    return w, b


def _bn(c):
    return (jnp.ones((c,), jnp.float32), jnp.zeros((c,), jnp.float32))


def _prep_conv_mm(w_oihw):
    """(O,I,kh,kw) -> im2col-matmul-ready (K_pad, N_pad) bf16 matrix."""
    o, i, kh, kw = w_oihw.shape
    k = kh * kw * i
    wm = jnp.transpose(w_oihw, (2, 3, 1, 0)).reshape(k, o)
    kp, np_ = _round_up(k, 128), _round_up(o, 128)
    return jnp.pad(wm, ((0, kp - k), (0, np_ - o))).astype(jnp.bfloat16)


def _prep_conv3x3_taps(w_oihw):
    """(O,I,3,3) -> per-tap (9, Cin_pad, Cout_pad) bf16 for the direct kernel."""
    o, i, kh, kw = w_oihw.shape
    cp, cop = _round_up(i, 128), _round_up(o, 128)
    wt = jnp.transpose(w_oihw, (2, 3, 1, 0)).reshape(kh * kw, i, o)
    return jnp.pad(wt, ((0, 0), (0, cp - i), (0, cop - o))).astype(jnp.bfloat16)


def _prep_fc(w, b):
    in_f, out_f = w.shape
    kp, np_ = _round_up(in_f, 128), _round_up(out_f, 128)
    wp = jnp.pad(w, ((0, kp - in_f), (0, np_ - out_f))).astype(jnp.bfloat16)
    bp = jnp.pad(b, (0, np_ - out_f)).reshape(1, np_).astype(jnp.float32)
    return wp, bp


def make_stn_params(kg, c, width):
    p = {}
    # NOTE: conv biases omitted -- with batch-stat BatchNorm right after each
    # conv, a per-channel bias cancels exactly in the normalization.
    p["c1_w"] = _prep_conv_mm(_conv_weight(kg, c, c, 1, 1)); p["bn1"] = _bn(c)
    p["c2_w"] = _prep_conv3x3_taps(_conv_weight(kg, c, c, 3, 3)); p["bn2"] = _bn(c)
    p["c3_w"] = _prep_conv_mm(_conv_weight(kg, c, c, 1, 1)); p["bn3"] = _bn(c)
    w1, b1 = _linear(kg, c * width * width, 64)
    p["fc1_w"], p["fc1_b"] = _prep_fc(w1, b1)
    w2, _ = _linear(kg, 64, 6, w_scale=0.01)
    b2 = jnp.array([1.0, 0.0, 0.0, 0.0, 1.0, 0.0], jnp.float32)  # near-identity affine
    p["fc2_w"], p["fc2_b"] = _prep_fc(w2, b2)
    return p


def make_bottleneck_params(kg, in_c, out_c, stride, downsample):
    p = {"stride": stride}
    p["c1"] = _prep_conv_mm(_conv_weight(kg, out_c, in_c, 1, 1));      p["bn1"] = _bn(out_c)
    p["c2"] = _prep_conv3x3_taps(_conv_weight(kg, out_c, out_c, 3, 3)); p["bn2"] = _bn(out_c)
    p["c3"] = _prep_conv_mm(_conv_weight(kg, out_c * 4, out_c, 1, 1)); p["bn3"] = _bn(out_c * 4)
    # conv1x1(ch*4 -> 2) is only ever channel-summed in mask(): fold the sum
    # over its 2 output channels into a single (C,) weight vector.
    w4 = _conv_weight(kg, 2, out_c * 4, 1, 1)
    p["w4s"] = jnp.sum(w4, axis=0).reshape(out_c * 4)
    if downsample:
        p["ds_w"] = _prep_conv_mm(_conv_weight(kg, out_c * 4, in_c, 1, 1))
        p["ds_bn"] = _bn(out_c * 4)
    return p


def make_resnet_params(kg, num_classes=10):
    p = {"conv1": _prep_conv_mm(_conv_weight(kg, 64, 3, 7, 7)), "bn1": _bn(64)}
    in_c = 64
    layers = []
    for out_c, blocks, stride in ((64, 3, 1), (128, 4, 2), (256, 23, 2), (512, 3, 2)):
        layer = []
        downsample = (stride != 1) or (in_c != out_c * 4)
        layer.append(make_bottleneck_params(kg, in_c, out_c, stride, downsample))
        in_c = out_c * 4
        for _ in range(1, blocks):
            layer.append(make_bottleneck_params(kg, in_c, out_c, 1, False))
        layers.append(layer)
    p["layers"] = layers
    wf, bf = _linear(kg, 512 * 4, num_classes)
    p["fc_w"], p["fc_b"] = _prep_fc(wf, bf)
    p["num_classes"] = num_classes
    return p


# ---------------------------------------------------------------------------
# STN (spatial transformer) forward
# ---------------------------------------------------------------------------

def _affine_grid(theta, h, w):
    """F.affine_grid(theta, (N,C,H,W)), align_corners=False."""
    xs = 2.0 * (jnp.arange(w, dtype=jnp.float32) + 0.5) / w - 1.0
    ys = 2.0 * (jnp.arange(h, dtype=jnp.float32) + 0.5) / h - 1.0
    gx = jnp.broadcast_to(xs[None, :], (h, w))
    gy = jnp.broadcast_to(ys[:, None], (h, w))
    base = jnp.stack([gx, gy, jnp.ones_like(gx)], axis=-1)      # (H, W, 3)
    return jnp.einsum("nkm,ijm->nijk", theta, base)             # (N, H, W, 2)


def _grid_sample(x, grid):
    """F.grid_sample bilinear / zeros padding / align_corners=False (NHWC)."""
    # TODO(synk): data-dependent bilinear gather kept in plain JAX
    # (take_along_axis); no clean rectangular-tile Pallas equivalent.
    n, h, w, c = x.shape
    gx, gy = grid[..., 0], grid[..., 1]
    ix = ((gx + 1.0) * w - 1.0) * 0.5
    iy = ((gy + 1.0) * h - 1.0) * 0.5
    ix0, iy0 = jnp.floor(ix), jnp.floor(iy)
    ix1, iy1 = ix0 + 1.0, iy0 + 1.0
    wx1, wy1 = ix - ix0, iy - iy0
    wx0, wy0 = 1.0 - wx1, 1.0 - wy1
    xf = x.reshape(n, h * w, c)

    def sample(iyf, ixf):
        valid = ((iyf >= 0) & (iyf <= h - 1) &
                 (ixf >= 0) & (ixf <= w - 1)).astype(x.dtype)
        iyc = jnp.clip(iyf.astype(jnp.int32), 0, h - 1)
        ixc = jnp.clip(ixf.astype(jnp.int32), 0, w - 1)
        idx = (iyc * w + ixc).reshape(n, h * w, 1)
        v = jnp.take_along_axis(xf, idx, axis=1).reshape(n, h, w, c)
        return v * valid[..., None]

    return (sample(iy0, ix0) * (wy0 * wx0)[..., None]
            + sample(iy0, ix1) * (wy0 * wx1)[..., None]
            + sample(iy1, ix0) * (wy1 * wx0)[..., None]
            + sample(iy1, ix1) * (wy1 * wx1)[..., None])


def stn_forward(p, x):
    n, h, w, c = x.shape
    a0 = _Act(x.astype(jnp.bfloat16))
    y1, s1, b1 = _conv1x1(a0, p["c1_w"], *p["bn1"])
    y2, s2, b2 = _conv3x3(_Act(y1, s1, b1, True), p["c2_w"], *p["bn2"])
    y3, s3, b3 = _conv1x1(_Act(y2, s2, b2, True), p["c3_w"], *p["bn3"])
    # torch .view(-1, C*W*W) flattens in (C, H, W) order; conv3's BN+ReLU is
    # applied inside the fc1 matmul prologue (scale/shift repeated per pixel).
    y3r = y3[..., :c]
    xs_flat = jnp.transpose(y3r, (0, 3, 1, 2)).reshape(n, c * h * w)
    sc_flat = jnp.repeat(s3[:c], h * w)
    sh_flat = jnp.repeat(b3[:c], h * w)
    hid = _fc_unit(xs_flat, p["fc1_w"], p["fc1_b"], sc_flat, sh_flat,
                   relu=True, in_relu=True, n_out=64)
    theta = _fc_unit(hid, p["fc2_w"], p["fc2_b"], None, None,
                     relu=False, in_relu=False, n_out=6).reshape(n, 2, 3)
    grid = _affine_grid(theta, h, w)
    return _grid_sample(x, grid)


# ---------------------------------------------------------------------------
# ResNet-101 (attention-mask Bottleneck) forward
# ---------------------------------------------------------------------------

def bottleneck_forward(p, act):
    stride = p["stride"]
    y1, s1, b1 = _conv1x1(act, p["c1"], *p["bn1"])
    y2, s2, b2 = _conv3x3(_Act(y1, s1, b1, True), p["c2"], *p["bn2"],
                          stride=stride)
    y3, s3, b3 = _conv1x1(_Act(y2, s2, b2, True), p["c3"], *p["bn3"])
    if "ds_w" in p:
        yr, sr, br = _conv1x1(act, p["ds_w"], *p["ds_bn"], stride=stride)
    else:
        yr = act.x
        c = yr.shape[-1]
        sr = jnp.ones((c,), jnp.float32)
        br = jnp.zeros((c,), jnp.float32)
    out = _residual_unit(y3, s3, b3, yr, sr, br, p["w4s"])
    return _Act(out)


def resnet_forward(p, x):
    y, s, b = _conv_im2col_unit(x.astype(jnp.bfloat16), p["conv1"], *p["bn1"],
                                kh=7, kw=7, stride=2, padding=3)
    out = _scale_shift_unit(y, s, b, relu=True)   # consumer (maxpool) can't fuse
    out = _max_pool_3x3_s2_p1(out)
    act = _Act(out)
    for layer in p["layers"]:
        for blk in layer:
            act = bottleneck_forward(blk, act)
    # AvgPool2d(1, stride=1) is the identity; flatten matches torch .view order
    n, h, w, c = act.x.shape
    feat = jnp.transpose(act.x, (0, 3, 1, 2)).reshape(n, c * h * w)
    return _fc_unit(feat, p["fc_w"], p["fc_b"], None, None,
                    relu=False, in_relu=False, n_out=p["num_classes"])


# ---------------------------------------------------------------------------
# stn_resnet101 wrapper
# ---------------------------------------------------------------------------

def stn_resnet101_forward(x_nchw):
    # mirrors stn_resnet101.forward: builds stn(a, b) with a = C, b = H, then
    # ResNet(Bottleneck, [3, 4, 23, 3]) -- both freshly (deterministically)
    # initialized.
    _, a, b, _ = x_nchw.shape
    kg = _KeyGen(1)
    stn_p = make_stn_params(kg, a, b)
    net_p = make_resnet_params(kg, num_classes=10)
    x = jnp.transpose(x_nchw, (0, 2, 3, 1)).astype(jnp.float32)   # NCHW -> NHWC
    x = stn_forward(stn_p, x)
    return resnet_forward(net_p, x)


if __name__ == "__main__":
    # ResNet conv1 needs 3 input channels; stn fc needs H == W.
    x = jax.random.normal(jax.random.PRNGKey(0), (2, 3, 16, 16), jnp.float32)
    out = stn_resnet101_forward(x)
    out = jax.block_until_ready(out)
    assert out.shape == (2, 10), out.shape
    print("KERNEL_OK")
</pallas_src>

<mosaic_0001>
module attributes {stable_mosaic.version = 11 : i64} {
  func.func @_mm_stats_kernel(%arg0: i32, %arg1: i32, %arg2: i32, %arg3: memref<512x128xbf16, #tpu.memory_space<vmem>>, %arg4: memref<128x128xbf16, #tpu.memory_space<vmem>>, %arg5: memref<512x128xbf16, #tpu.memory_space<vmem>>, %arg6: memref<1x128xf32, #tpu.memory_space<vmem>>, %arg7: memref<1x128xf32, #tpu.memory_space<vmem>>, %arg8: memref<512x128xf32, #tpu.memory_space<vmem>>) attributes {dimension_semantics = [#tpu.dimension_semantics<parallel>, #tpu.dimension_semantics<parallel>, #tpu.dimension_semantics<arbitrary>], iteration_bounds = array<i64: 1, 1, 1>, scalar_prefetch = 0 : i64, scratch_operands = 1 : i64, tpu.core_type = #tpu.core_type<tc>, window_params = [{transform_indices = @transform_0, window_bounds = array<i64: 512, 128>}, {transform_indices = @transform_1, window_bounds = array<i64: 128, 128>}, {transform_indices = @transform_2, window_bounds = array<i64: 512, 128>}, {transform_indices = @transform_3, window_bounds = array<i64: 1, 128>}, {transform_indices = @transform_4, window_bounds = array<i64: 1, 128>}]} {
    %c0_i32 = arith.constant 0 : i32
    %0 = arith.cmpi eq, %arg2, %c0_i32 : i32
    %1 = arith.extui %0 : i1 to i32
    %c0_i32_0 = arith.constant 0 : i32
    %2 = arith.cmpi ne, %1, %c0_i32_0 : i32
    scf.if %2 {
      %cst_10 = arith.constant 0.000000e+00 : f32
      %12 = vector.broadcast %cst_10 : f32 to vector<512x128xf32>
      %c0_11 = arith.constant 0 : index
      %c0_12 = arith.constant 0 : index
      %13 = vector.load %arg8[%c0_11, %c0_12] : memref<512x128xf32, #tpu.memory_space<vmem>>, vector<512x128xf32>
      tpu.vector_store %arg8[%c0_11, %c0_12], %12 {strides = array<i32>} : memref<512x128xf32, #tpu.memory_space<vmem>>, vector<512x128xf32>,
    } else {
    }
    %c0 = arith.constant 0 : index
    %c0_1 = arith.constant 0 : index
    %3 = vector.load %arg3[%c0, %c0_1] : memref<512x128xbf16, #tpu.memory_space<vmem>>, vector<512x128xbf16>
    %c0_2 = arith.constant 0 : index
    %c0_3 = arith.constant 0 : index
    %4 = vector.load %arg8[%c0_2, %c0_3] : memref<512x128xf32, #tpu.memory_space<vmem>>, vector<512x128xf32>
    %c0_4 = arith.constant 0 : index
    %c0_5 = arith.constant 0 : index
    %5 = vector.load %arg4[%c0_4, %c0_5] : memref<128x128xbf16, #tpu.memory_space<vmem>>, vector<128x128xbf16>
    %cst = arith.constant dense<0.000000e+00> : vector<512x128xf32>
    %6 = tpu.matmul %3, %5, %cst {dimension_numbers = #tpu.dot_dimension_numbers<[1], [0], [0], [1], [0, 0, 1, 1], [], []>} : vector<512x128xbf16>, vector<128x128xbf16>, vector<512x128xf32> -> vector<512x128xf32>
    %7 = arith.addf %4, %6 : vector<512x128xf32>
    %c0_6 = arith.constant 0 : index
    %c0_7 = arith.constant 0 : index
    %8 = vector.load %arg8[%c0_6, %c0_7] : memref<512x128xf32, #tpu.memory_space<vmem>>, vector<512x128xf32>
    tpu.vector_store %arg8[%c0_6, %c0_7], %7 {strides = array<i32>} : memref<512x128xf32, #tpu.memory_space<vmem>>, vector<512x128xf32>,
    %c0_i32_8 = arith.constant 0 : i32
    %9 = arith.cmpi eq, %arg2, %c0_i32_8 : i32
    %10 = arith.extui %9 : i1 to i32
    %c0_i32_9 = arith.constant 0 : i32
    %11 = arith.cmpi ne, %10, %c0_i32_9 : i32
    scf.if %11 {
      %c0_10 = arith.constant 0 : index
      %c0_11 = arith.constant 0 : index
      %12 = vector.load %arg8[%c0_10, %c0_11] : memref<512x128xf32, #tpu.memory_space<vmem>>, vector<512x128xf32>
      %13 = arith.truncf %12 : vector<512x128xf32> to vector<512x128xbf16>
      %c0_12 = arith.constant 0 : index
      %c0_13 = arith.constant 0 : index
      %14 = vector.load %arg5[%c0_12, %c0_13] : memref<512x128xbf16, #tpu.memory_space<vmem>>, vector<512x128xbf16>
      tpu.vector_store %arg5[%c0_12, %c0_13], %13 {strides = array<i32>} : memref<512x128xbf16, #tpu.memory_space<vmem>>, vector<512x128xbf16>,
      %cst_14 = arith.constant dense<0.000000e+00> : vector<128xf32>
      %15 = vector.multi_reduction <add>, %12, %cst_14 [0] : vector<512x128xf32> to vector<128xf32>
      %16 = vector.shape_cast %15 : vector<128xf32> to vector<1x128xf32>
      %c0_15 = arith.constant 0 : index
      %c0_16 = arith.constant 0 : index
      %17 = vector.load %arg6[%c0_15, %c0_16] : memref<1x128xf32, #tpu.memory_space<vmem>>, vector<1x128xf32>
      tpu.vector_store %arg6[%c0_15, %c0_16], %16 {strides = array<i32>} : memref<1x128xf32, #tpu.memory_space<vmem>>, vector<1x128xf32>,
      %18 = arith.mulf %12, %12 : vector<512x128xf32>
      %cst_17 = arith.constant dense<0.000000e+00> : vector<128xf32>
      %19 = vector.multi_reduction <add>, %18, %cst_17 [0] : vector<512x128xf32> to vector<128xf32>
      %20 = vector.shape_cast %19 : vector<128xf32> to vector<1x128xf32>
      %c0_18 = arith.constant 0 : index
      %c0_19 = arith.constant 0 : index
      %21 = vector.load %arg7[%c0_18, %c0_19] : memref<1x128xf32, #tpu.memory_space<vmem>>, vector<1x128xf32>
      tpu.vector_store %arg7[%c0_18, %c0_19], %20 {strides = array<i32>} : memref<1x128xf32, #tpu.memory_space<vmem>>, vector<1x128xf32>,
    } else {
    }
    return
  }
  func.func @transform_0(%arg0: i32, %arg1: i32, %arg2: i32) -> (i32, i32) {
    %c0_i32 = arith.constant 0 : i32
    return %arg0, %arg2 : i32, i32
  }
  func.func @transform_1(%arg0: i32, %arg1: i32, %arg2: i32) -> (i32, i32) {
    %c0_i32 = arith.constant 0 : i32
    return %arg2, %arg1 : i32, i32
  }
  func.func @transform_2(%arg0: i32, %arg1: i32, %arg2: i32) -> (i32, i32) {
    %c0_i32 = arith.constant 0 : i32
    return %arg0, %arg1 : i32, i32
  }
  func.func @transform_3(%arg0: i32, %arg1: i32, %arg2: i32) -> (i32, i32) {
    %c0_i32 = arith.constant 0 : i32
    return %arg0, %arg1 : i32, i32
  }
  func.func @transform_4(%arg0: i32, %arg1: i32, %arg2: i32) -> (i32, i32) {
    %c0_i32 = arith.constant 0 : i32
    return %arg0, %arg1 : i32, i32
  }
}

</mosaic_0001>

<llo_original>
// kernel: _conv1x1_unit.1
$region0: #{_conv1x1_unit.1}
  #allocation0 [shape = 'u32[]', space=smem, size = 0x4, offset = 0x4, fixed_abs, tag = 'smem constant byte address 0x4 - core index']
  #allocation1 [shape = 'u32[144,128]{1,0:T(1,128)}', space=vmem, size = 0x12000, scoped, tag = 'internal scratch']
  #allocation2 [shape = 'f32[512,128]{1,0:T(8,128)}', space=vmem, size = 0x40000, scoped, tag = 'scratch operand']
  %s0 = inlined_call_operand.vmem [shape: bf16[512,128], index: 0, kind: input, shape index: {}]
  %s1 = inlined_call_operand.vmem [shape: bf16[128,128], index: 1, kind: input, shape index: {}]
  %s2 = inlined_call_operand.hbm [shape: bf16[512,128], index: 2, kind: output, shape index: {0}]
  %s3 = inlined_call_operand.vmem [shape: f32[1,128], index: 3, kind: output, shape index: {1}]
  %s4 = inlined_call_operand.vmem [shape: f32[1,128], index: 4, kind: output, shape index: {2}]
  %5 = xla_tuple %s2, %s3, %s4
  %s6 = sld [smem:[#allocation0]]
  $region42: #{_conv1x1_unit.1} parent=0
    _
  %s8 = ssub.s32 1, %s6
  %s9 = scalar_select 0, %s8, %s6
  $region1: #{_conv1x1_unit.1} parent=0
    #allocation3 [shape = 'u8[131072]{0}', space=vmem, size = 0x20000, scoped, tag = 'output window, operand 0, single buffered']
    #allocation4 [shape = 's32[1]{0}', space=sflag, size = 0x4, scoped, tag = 'scoped memory for _conv1x1_unit.1']
    %10 = vsyncpa [#allocation4], 0
    // Predicated region
    $region2: #{_conv1x1_unit.1} parent=1 // pred_check
      _
    $region3: #{_conv1x1_unit.1} parent=1 // pred_check_branch
      %12 = sbr.rel (0) target = $region5
    $region4: #{_conv1x1_unit.1} parent=1 // pred_region
      _
    $region5: #{_conv1x1_unit.1} parent=1 // pred_fallthru
      _
    // Predicated region
    $region6: #{_conv1x1_unit.1} parent=1 // pred_check
      _
    $region7: #{_conv1x1_unit.1} parent=1 // pred_check_branch
      %14 = sbr.rel (0) target = $region9
    $region8: #{_conv1x1_unit.1} parent=1 // pred_region
      _
    $region9: #{_conv1x1_unit.1} parent=1 // pred_fallthru
      _
    %p16 = scmp.eq.s32.totalorder 0, 0
    // Predicated region
    $region10: #{_conv1x1_unit.1} parent=1 // pred_check
      %p17 = pneg %p16
    $region11: #{_conv1x1_unit.1} parent=1 // pred_check_branch
      %19 = sbr.rel (%p17) target = $region13
    $region12: #{_conv1x1_unit.1} parent=1 // pred_region
      %20 = vst [vmem:[#allocation2] sm:$0xff] 0.0
      %21 = vst [vmem:[#allocation2 + $0x8] sm:$0xff] 0.0
      %22 = vst [vmem:[#allocation2 + $0x10] sm:$0xff] 0.0
      %23 = vst [vmem:[#allocation2 + $0x18] sm:$0xff] 0.0
      %24 = vst [vmem:[#allocation2 + $0x20] sm:$0xff] 0.0
      %25 = vst [vmem:[#allocation2 + $0x28] sm:$0xff] 0.0
      %26 = vst [vmem:[#allocation2 + $0x30] sm:$0xff] 0.0
      %27 = vst [vmem:[#allocation2 + $0x38] sm:$0xff] 0.0
      %28 = vst [vmem:[#allocation2 + $0x40] sm:$0xff] 0.0
      %29 = vst [vmem:[#allocation2 + $0x48] sm:$0xff] 0.0
      %30 = vst [vmem:[#allocation2 + $0x50] sm:$0xff] 0.0
      %31 = vst [vmem:[#allocation2 + $0x58] sm:$0xff] 0.0
      %32 = vst [vmem:[#allocation2 + $0x60] sm:$0xff] 0.0
      %33 = vst [vmem:[#allocation2 + $0x68] sm:$0xff] 0.0
      %34 = vst [vmem:[#allocation2 + $0x70] sm:$0xff] 0.0
      %35 = vst [vmem:[#allocation2 + $0x78] sm:$0xff] 0.0
      %36 = vst [vmem:[#allocation2 + $0x80] sm:$0xff] 0.0
      %37 = vst [vmem:[#allocation2 + $0x88] sm:$0xff] 0.0
      %38 = vst [vmem:[#allocation2 + $0x90] sm:$0xff] 0.0
      %39 = vst [vmem:[#allocation2 + $0x98] sm:$0xff] 0.0
      %40 = vst [vmem:[#allocation2 + $0xa0] sm:$0xff] 0.0
      %41 = vst [vmem:[#allocation2 + $0xa8] sm:$0xff] 0.0
      %42 = vst [vmem:[#allocation2 + $0xb0] sm:$0xff] 0.0
      %43 = vst [vmem:[#allocation2 + $0xb8] sm:$0xff] 0.0
      %44 = vst [vmem:[#allocation2 + $0xc0] sm:$0xff] 0.0
      %45 = vst [vmem:[#allocation2 + $0xc8] sm:$0xff] 0.0
      %46 = vst [vmem:[#allocation2 + $0xd0] sm:$0xff] 0.0
      %47 = vst [vmem:[#allocation2 + $0xd8] sm:$0xff] 0.0
      %48 = vst [vmem:[#allocation2 + $0xe0] sm:$0xff] 0.0
      %49 = vst [vmem:[#allocation2 + $0xe8] sm:$0xff] 0.0
      %50 = vst [vmem:[#allocation2 + $0xf0] sm:$0xff] 0.0
      %51 = vst [vmem:[#allocation2 + $0xf8] sm:$0xff] 0.0
      %52 = vst [vmem:[#allocation2 + $0x100] sm:$0xff] 0.0
      %53 = vst [vmem:[#allocation2 + $0x108] sm:$0xff] 0.0
      %54 = vst [vmem:[#allocation2 + $0x110] sm:$0xff] 0.0
      %55 = vst [vmem:[#allocation2 + $0x118] sm:$0xff] 0.0
      %56 = vst [vmem:[#allocation2 + $0x120] sm:$0xff] 0.0
      %57 = vst [vmem:[#allocation2 + $0x128] sm:$0xff] 0.0
      %58 = vst [vmem:[#allocation2 + $0x130] sm:$0xff] 0.0
      %59 = vst [vmem:[#allocation2 + $0x138] sm:$0xff] 0.0
      %60 = vst [vmem:[#allocation2 + $0x140] sm:$0xff] 0.0
      %61 = vst [vmem:[#allocation2 + $0x148] sm:$0xff] 0.0
      %62 = vst [vmem:[#allocation2 + $0x150] sm:$0xff] 0.0
      %63 = vst [vmem:[#allocation2 + $0x158] sm:$0xff] 0.0
      %64 = vst [vmem:[#allocation2 + $0x160] sm:$0xff] 0.0
      %65 = vst [vmem:[#allocation2 + $0x168] sm:$0xff] 0.0
      %66 = vst [vmem:[#allocation2 + $0x170] sm:$0xff] 0.0
      %67 = vst [vmem:[#allocation2 + $0x178] sm:$0xff] 0.0
      %68 = vst [vmem:[#allocation2 + $0x180] sm:$0xff] 0.0
      %69 = vst [vmem:[#allocation2 + $0x188] sm:$0xff] 0.0
      %70 = vst [vmem:[#allocation2 + $0x190] sm:$0xff] 0.0
      %71 = vst [vmem:[#allocation2 + $0x198] sm:$0xff] 0.0
      %72 = vst [vmem:[#allocation2 + $0x1a0] sm:$0xff] 0.0
      %73 = vst [vmem:[#allocation2 + $0x1a8] sm:$0xff] 0.0
      %74 = vst [vmem:[#allocation2 + $0x1b0] sm:$0xff] 0.0
      %75 = vst [vmem:[#allocation2 + $0x1b8] sm:$0xff] 0.0
      %76 = vst [vmem:[#allocation2 + $0x1c0] sm:$0xff] 0.0
      %77 = vst [vmem:[#allocation2 + $0x1c8] sm:$0xff] 0.0
      %78 = vst [vmem:[#allocation2 + $0x1d0] sm:$0xff] 0.0
      %79 = vst [vmem:[#allocation2 + $0x1d8] sm:$0xff] 0.0
      %80 = vst [vmem:[#allocation2 + $0x1e0] sm:$0xff] 0.0
      %81 = vst [vmem:[#allocation2 + $0x1e8] sm:$0xff] 0.0
      %82 = vst [vmem:[#allocation2 + $0x1f0] sm:$0xff] 0.0
      %83 = vst [vmem:[#allocation2 + $0x1f8] sm:$0xff] 0.0
    $region13: #{_conv1x1_unit.1} parent=1 // pred_fallthru
      _
    %v84 = vld [vmem:[%s0] sm:$0xf]
    %v85 = vld [vmem:[%s0 + $0x4] sm:$0xf]
    %v86 = vld [vmem:[%s0 + $0x8] sm:$0xf]
    %v87 = vld [vmem:[%s0 + $0xc] sm:$0xf]
    %v88 = vld [vmem:[%s0 + $0x10] sm:$0xf]
    %v89 = vld [vmem:[%s0 + $0x14] sm:$0xf]
    %v90 = vld [vmem:[%s0 + $0x18] sm:$0xf]
    %v91 = vld [vmem:[%s0 + $0x1c] sm:$0xf]
    %v92 = vld [vmem:[%s0 + $0x20] sm:$0xf]
    %v93 = vld [vmem:[%s0 + $0x24] sm:$0xf]
    %v94 = vld [vmem:[%s0 + $0x28] sm:$0xf]
    %v95 = vld [vmem:[%s0 + $0x2c] sm:$0xf]
    %v96 = vld [vmem:[%s0 + $0x30] sm:$0xf]
    %v97 = vld [vmem:[%s0 + $0x34] sm:$0xf]
    %v98 = vld [vmem:[%s0 + $0x38] sm:$0xf]
    %v99 = vld [vmem:[%s0 + $0x3c] sm:$0xf]
    %v100 = vld [vmem:[%s0 + $0x40] sm:$0xf]
    %v101 = vld [vmem:[%s0 + $0x44] sm:$0xf]
    %v102 = vld [vmem:[%s0 + $0x48] sm:$0xf]
    %v103 = vld [vmem:[%s0 + $0x4c] sm:$0xf]
    %v104 = vld [vmem:[%s0 + $0x50] sm:$0xf]
    %v105 = vld [vmem:[%s0 + $0x54] sm:$0xf]
    %v106 = vld [vmem:[%s0 + $0x58] sm:$0xf]
    %v107 = vld [vmem:[%s0 + $0x5c] sm:$0xf]
    %v108 = vld [vmem:[%s0 + $0x60] sm:$0xf]
    %v109 = vld [vmem:[%s0 + $0x64] sm:$0xf]
    %v110 = vld [vmem:[%s0 + $0x68] sm:$0xf]
    %v111 = vld [vmem:[%s0 + $0x6c] sm:$0xf]
    %v112 = vld [vmem:[%s0 + $0x70] sm:$0xf]
    %v113 = vld [vmem:[%s0 + $0x74] sm:$0xf]
    %v114 = vld [vmem:[%s0 + $0x78] sm:$0xf]
    %v115 = vld [vmem:[%s0 + $0x7c] sm:$0xf]
    %v116 = vld [vmem:[%s0 + $0x80] sm:$0xf]
    %v117 = vld [vmem:[%s0 + $0x84] sm:$0xf]
    %v118 = vld [vmem:[%s0 + $0x88] sm:$0xf]
    %v119 = vld [vmem:[%s0 + $0x8c] sm:$0xf]
    %v120 = vld [vmem:[%s0 + $0x90] sm:$0xf]
    %v121 = vld [vmem:[%s0 + $0x94] sm:$0xf]
    %v122 = vld [vmem:[%s0 + $0x98] sm:$0xf]
    %v123 = vld [vmem:[%s0 + $0x9c] sm:$0xf]
    %v124 = vld [vmem:[%s0 + $0xa0] sm:$0xf]
    %v125 = vld [vmem:[%s0 + $0xa4] sm:$0xf]
    %v126 = vld [vmem:[%s0 + $0xa8] sm:$0xf]
    %v127 = vld [vmem:[%s0 + $0xac] sm:$0xf]
    %v128 = vld [vmem:[%s0 + $0xb0] sm:$0xf]
    %v129 = vld [vmem:[%s0 + $0xb4] sm:$0xf]
    %v130 = vld [vmem:[%s0 + $0xb8] sm:$0xf]
    %v131 = vld [vmem:[%s0 + $0xbc] sm:$0xf]
    %v132 = vld [vmem:[%s0 + $0xc0] sm:$0xf]
    %v133 = vld [vmem:[%s0 + $0xc4] sm:$0xf]
    %v134 = vld [vmem:[%s0 + $0xc8] sm:$0xf]
    %v135 = vld [vmem:[%s0 + $0xcc] sm:$0xf]
    %v136 = vld [vmem:[%s0 + $0xd0] sm:$0xf]
    %v137 = vld [vmem:[%s0 + $0xd4] sm:$0xf]
    %v138 = vld [vmem:[%s0 + $0xd8] sm:$0xf]
    %v139 = vld [vmem:[%s0 + $0xdc] sm:$0xf]
    %v140 = vld [vmem:[%s0 + $0xe0] sm:$0xf]
    %v141 = vld [vmem:[%s0 + $0xe4] sm:$0xf]
    %v142 = vld [vmem:[%s0 + $0xe8] sm:$0xf]
    %v143 = vld [vmem:[%s0 + $0xec] sm:$0xf]
    %v144 = vld [vmem:[%s0 + $0xf0] sm:$0xf]
    %v145 = vld [vmem:[%s0 + $0xf4] sm:$0xf]
    %v146 = vld [vmem:[%s0 + $0xf8] sm:$0xf]
    %v147 = vld [vmem:[%s0 + $0xfc] sm:$0xf]
    %v148 = vld [vmem:[#allocation2] sm:$0xff]
    %v149 = vld [vmem:[#allocation2 + $0x8] sm:$0xff]
    %v150 = vld [vmem:[#allocation2 + $0x10] sm:$0xff]
    %v151 = vld [vmem:[#allocation2 + $0x18] sm:$0xff]
    %v152 = vld [vmem:[#allocation2 + $0x20] sm:$0xff]
    %v153 = vld [vmem:[#allocation2 + $0x28] sm:$0xff]
    %v154 = vld [vmem:[#allocation2 + $0x30] sm:$0xff]
    %v155 = vld [vmem:[#allocation2 + $0x38] sm:$0xff]
    %v156 = vld [vmem:[#allocation2 + $0x40] sm:$0xff]
    %v157 = vld [vmem:[#allocation2 + $0x48] sm:$0xff]
    %v158 = vld [vmem:[#allocation2 + $0x50] sm:$0xff]
    %v159 = vld [vmem:[#allocation2 + $0x58] sm:$0xff]
    %v160 = vld [vmem:[#allocation2 + $0x60] sm:$0xff]
    %v161 = vld [vmem:[#allocation2 + $0x68] sm:$0xff]
    %v162 = vld [vmem:[#allocation2 + $0x70] sm:$0xff]
    %v163 = vld [vmem:[#allocation2 + $0x78] sm:$0xff]
    %v164 = vld [vmem:[#allocation2 + $0x80] sm:$0xff]
    %v165 = vld [vmem:[#allocation2 + $0x88] sm:$0xff]
    %v166 = vld [vmem:[#allocation2 + $0x90] sm:$0xff]
    %v167 = vld [vmem:[#allocation2 + $0x98] sm:$0xff]
    %v168 = vld [vmem:[#allocation2 + $0xa0] sm:$0xff]
    %v169 = vld [vmem:[#allocation2 + $0xa8] sm:$0xff]
    %v170 = vld [vmem:[#allocation2 + $0xb0] sm:$0xff]
    %v171 = vld [vmem:[#allocation2 + $0xb8] sm:$0xff]
    %v172 = vld [vmem:[#allocation2 + $0xc0] sm:$0xff]
    %v173 = vld [vmem:[#allocation2 + $0xc8] sm:$0xff]
    %v174 = vld [vmem:[#allocation2 + $0xd0] sm:$0xff]
    %v175 = vld [vmem:[#allocation2 + $0xd8] sm:$0xff]
    %v176 = vld [vmem:[#allocation2 + $0xe0] sm:$0xff]
    %v177 = vld [vmem:[#allocation2 + $0xe8] sm:$0xff]
    %v178 = vld [vmem:[#allocation2 + $0xf0] sm:$0xff]
    %v179 = vld [vmem:[#allocation2 + $0xf8] sm:$0xff]
    %v180 = vld [vmem:[#allocation2 + $0x100] sm:$0xff]
    %v181 = vld [vmem:[#allocation2 + $0x108] sm:$0xff]
    %v182 = vld [vmem:[#allocation2 + $0x110] sm:$0xff]
    %v183 = vld [vmem:[#allocation2 + $0x118] sm:$0xff]
    %v184 = vld [vmem:[#allocation2 + $0x120] sm:$0xff]
    %v185 = vld [vmem:[#allocation2 + $0x128] sm:$0xff]
    %v186 = vld [vmem:[#allocation2 + $0x130] sm:$0xff]
    %v187 = vld [vmem:[#allocation2 + $0x138] sm:$0xff]
    %v188 = vld [vmem:[#allocation2 + $0x140] sm:$0xff]
    %v189 = vld [vmem:[#allocation2 + $0x148] sm:$0xff]
    %v190 = vld [vmem:[#allocation2 + $0x150] sm:$0xff]
    %v191 = vld [vmem:[#allocation2 + $0x158] sm:$0xff]
    %v192 = vld [vmem:[#allocation2 + $0x160] sm:$0xff]
    %v193 = vld [vmem:[#allocation2 + $0x168] sm:$0xff]
    %v194 = vld [vmem:[#allocation2 + $0x170] sm:$0xff]
    %v195 = vld [vmem:[#allocation2 + $0x178] sm:$0xff]
    %v196 = vld [vmem:[#allocation2 + $0x180] sm:$0xff]
    %v197 = vld [vmem:[#allocation2 + $0x188] sm:$0xff]
    %v198 = vld [vmem:[#allocation2 + $0x190] sm:$0xff]
    %v199 = vld [vmem:[#allocation2 + $0x198] sm:$0xff]
    %v200 = vld [vmem:[#allocation2 + $0x1a0] sm:$0xff]
    %v201 = vld [vmem:[#allocation2 + $0x1a8] sm:$0xff]
    %v202 = vld [vmem:[#allocation2 + $0x1b0] sm:$0xff]
    %v203 = vld [vmem:[#allocation2 + $0x1b8] sm:$0xff]
    %v204 = vld [vmem:[#allocation2 + $0x1c0] sm:$0xff]
    %v205 = vld [vmem:[#allocation2 + $0x1c8] sm:$0xff]
    %v206 = vld [vmem:[#allocation2 + $0x1d0] sm:$0xff]
    %v207 = vld [vmem:[#allocation2 + $0x1d8] sm:$0xff]
    %v208 = vld [vmem:[#allocation2 + $0x1e0] sm:$0xff]
    %v209 = vld [vmem:[#allocation2 + $0x1e8] sm:$0xff]
    %v210 = vld [vmem:[#allocation2 + $0x1f0] sm:$0xff]
    %v211 = vld [vmem:[#allocation2 + $0x1f8] sm:$0xff]
    %v212 = vld [vmem:[%s1] sm:$0xf]
    %v213 = vld [vmem:[%s1 + $0x4] sm:$0xf]
    %v214 = vld [vmem:[%s1 + $0x8] sm:$0xf]
    %v215 = vld [vmem:[%s1 + $0xc] sm:$0xf]
    %v216 = vld [vmem:[%s1 + $0x10] sm:$0xf]
    %v217 = vld [vmem:[%s1 + $0x14] sm:$0xf]
    %v218 = vld [vmem:[%s1 + $0x18] sm:$0xf]
    %v219 = vld [vmem:[%s1 + $0x1c] sm:$0xf]
    %v220 = vld [vmem:[%s1 + $0x20] sm:$0xf]
    %v221 = vld [vmem:[%s1 + $0x24] sm:$0xf]
    %v222 = vld [vmem:[%s1 + $0x28] sm:$0xf]
    %v223 = vld [vmem:[%s1 + $0x2c] sm:$0xf]
    %v224 = vld [vmem:[%s1 + $0x30] sm:$0xf]
    %v225 = vld [vmem:[%s1 + $0x34] sm:$0xf]
    %v226 = vld [vmem:[%s1 + $0x38] sm:$0xf]
    %v227 = vld [vmem:[%s1 + $0x3c] sm:$0xf]
    %v292 = vunpack.c.l.b16 %v84
    %v293 = vunpack.c.l.b16 %v85
    %v294 = vunpack.c.l.b16 %v86
    %v295 = vunpack.c.l.b16 %v87
    %v296 = vunpack.c.l.b16 %v88
    %v297 = vunpack.c.l.b16 %v89
    %v298 = vunpack.c.l.b16 %v90
    %v299 = vunpack.c.l.b16 %v91
    %v300 = vunpack.c.l.b16 %v92
    %v301 = vunpack.c.l.b16 %v93
    %v302 = vunpack.c.l.b16 %v94
    %v303 = vunpack.c.l.b16 %v95
    %v304 = vunpack.c.l.b16 %v96
    %v305 = vunpack.c.l.b16 %v97
    %v306 = vunpack.c.l.b16 %v98
    %v307 = vunpack.c.l.b16 %v99
    %v308 = vunpack.c.l.b16 %v100
    %v309 = vunpack.c.l.b16 %v101
    %v310 = vunpack.c.l.b16 %v102
    %v311 = vunpack.c.l.b16 %v103
    %v312 = vunpack.c.l.b16 %v104
    %v313 = vunpack.c.l.b16 %v105
    %v314 = vunpack.c.l.b16 %v106
    %v315 = vunpack.c.l.b16 %v107
    %v316 = vunpack.c.l.b16 %v108
    %v317 = vunpack.c.l.b16 %v109
    %v318 = vunpack.c.l.b16 %v110
    %v319 = vunpack.c.l.b16 %v111
    %v320 = vunpack.c.l.b16 %v112
    %v321 = vunpack.c.l.b16 %v113
    %v322 = vunpack.c.l.b16 %v114
    %v323 = vunpack.c.l.b16 %v115
    %v324 = vunpack.c.l.b16 %v116
    %v325 = vunpack.c.l.b16 %v117
    %v326 = vunpack.c.l.b16 %v118
    %v327 = vunpack.c.l.b16 %v119
    %v328 = vunpack.c.l.b16 %v120
    %v329 = vunpack.c.l.b16 %v121
    %v330 = vunpack.c.l.b16 %v122
    %v331 = vunpack.c.l.b16 %v123
    %v332 = vunpack.c.l.b16 %v124
    %v333 = vunpack.c.l.b16 %v125
    %v334 = vunpack.c.l.b16 %v126
    %v335 = vunpack.c.l.b16 %v127
    %v336 = vunpack.c.l.b16 %v128
    %v337 = vunpack.c.l.b16 %v129
    %v338 = vunpack.c.l.b16 %v130
    %v339 = vunpack.c.l.b16 %v131
    %v340 = vunpack.c.l.b16 %v132
    %v341 = vunpack.c.l.b16 %v133
    %v342 = vunpack.c.l.b16 %v134
    %v343 = vunpack.c.l.b16 %v135
    %v344 = vunpack.c.l.b16 %v136
    %v345 = vunpack.c.l.b16 %v137
    %v346 = vunpack.c.l.b16 %v138
    %v347 = vunpack.c.l.b16 %v139
    %v348 = vunpack.c.l.b16 %v140
    %v349 = vunpack.c.l.b16 %v141
    %v350 = vunpack.c.l.b16 %v142
    %v351 = vunpack.c.l.b16 %v143
    %v352 = vunpack.c.l.b16 %v144
    %v353 = vunpack.c.l.b16 %v145
    %v354 = vunpack.c.l.b16 %v146
    %v355 = vunpack.c.l.b16 %v147
    %v356 = vpack.c.b16 %v293, %v292
    %v357 = vpack.c.b16 %v295, %v294
    %v358 = vpack.c.b16 %v297, %v296
    %v359 = vpack.c.b16 %v299, %v298
    %v360 = vpack.c.b16 %v301, %v300
    %v361 = vpack.c.b16 %v303, %v302
    %v362 = vpack.c.b16 %v305, %v304
    %v363 = vpack.c.b16 %v307, %v306
    %v364 = vpack.c.b16 %v309, %v308
    %v365 = vpack.c.b16 %v311, %v310
    %v366 = vpack.c.b16 %v313, %v312
    %v367 = vpack.c.b16 %v315, %v314
    %v368 = vpack.c.b16 %v317, %v316
    %v369 = vpack.c.b16 %v319, %v318
    %v370 = vpack.c.b16 %v321, %v320
    %v371 = vpack.c.b16 %v323, %v322
    %v372 = vpack.c.b16 %v325, %v324
    %v373 = vpack.c.b16 %v327, %v326
    %v374 = vpack.c.b16 %v329, %v328
    %v375 = vpack.c.b16 %v331, %v330
    %v376 = vpack.c.b16 %v333, %v332
    %v377 = vpack.c.b16 %v335, %v334
    %v378 = vpack.c.b16 %v337, %v336
    %v379 = vpack.c.b16 %v339, %v338
    %v380 = vpack.c.b16 %v341, %v340
    %v381 = vpack.c.b16 %v343, %v342
    %v382 = vpack.c.b16 %v345, %v344
    %v383 = vpack.c.b16 %v347, %v346
    %v384 = vpack.c.b16 %v349, %v348
    %v385 = vpack.c.b16 %v351, %v350
    %v386 = vpack.c.b16 %v353, %v352
    %v387 = vpack.c.b16 %v355, %v354
    %v436 = vunpack.c.l.b16 %v212
    %v437 = vunpack.c.l.b16 %v213
    %v438 = vunpack.c.l.b16 %v214
    %v439 = vunpack.c.l.b16 %v215
    %v440 = vunpack.c.l.b16 %v216
    %v441 = vunpack.c.l.b16 %v217
    %v442 = vunpack.c.l.b16 %v218
    %v443 = vunpack.c.l.b16 %v219
    %v444 = vunpack.c.l.b16 %v220
    %v445 = vunpack.c.l.b16 %v221
    %v446 = vunpack.c.l.b16 %v222
    %v447 = vunpack.c.l.b16 %v223
    %v448 = vunpack.c.l.b16 %v224
    %v449 = vunpack.c.l.b16 %v225
    %v450 = vunpack.c.l.b16 %v226
    %v451 = vunpack.c.l.b16 %v227
    %v452 = vpack.c.b16 %v437, %v436
    %v453 = vpack.c.b16 %v439, %v438
    %v454 = vpack.c.b16 %v441, %v440
    %v455 = vpack.c.b16 %v443, %v442
    %v456 = vpack.c.b16 %v445, %v444
    %v457 = vpack.c.b16 %v447, %v446
    %v458 = vpack.c.b16 %v449, %v448
    %v459 = vpack.c.b16 %v451, %v450
    %468 = vmatprep.subr.bf16.mxu0 0
    %469 = vmatpush1.bf16.msra.mxu0 %v459
    %470 = vmatprep.subr.bf16.mxu0 0
    %471 = vmatpush1.bf16.msra.mxu0 %v458
    %472 = vmatprep.subr.bf16.mxu0 0
    %473 = vmatpush1.bf16.msra.mxu0 %v457
    %474 = vmatprep.subr.bf16.mxu0 0
    %475 = vmatpush1.bf16.msra.mxu0 %v456
    %476 = vmatprep.subr.bf16.mxu0 0
    %477 = vmatpush1.bf16.msra.mxu0 %v455
    %478 = vmatprep.subr.bf16.mxu0 0
    %479 = vmatpush1.bf16.msra.mxu0 %v454
    %480 = vmatprep.subr.bf16.mxu0 0
    %481 = vmatpush1.bf16.msra.mxu0 %v453
    %482 = vmatprep.subr.bf16.mxu0 0
    %483 = vmatpush1.bf16.msra.mxu0 %v452
    %484 = vmatprep.subr.bf16.mxu0 0
    %485 = vmatpush2.bf16.msra.mxu0 0
    %486 = vmatprep.subr.bf16.mxu0 0
    %487 = vmatpush2.bf16.msra.mxu0 0
    %488 = vmatprep.subr.bf16.mxu0 0
    %489 = vmatpush2.bf16.msra.mxu0 0
    %490 = vmatprep.subr.bf16.mxu0 0
    %491 = vmatpush2.bf16.msra.mxu0 0
    %492 = vmatprep.subr.bf16.mxu0 0
    %493 = vmatpush2.bf16.msra.mxu0 0
    %494 = vmatprep.subr.bf16.mxu0 0
    %495 = vmatpush2.bf16.msra.mxu0 0
    %496 = vmatprep.subr.bf16.mxu0 0
    %497 = vmatpush2.bf16.msra.mxu0 0
    %498 = vmatprep.subr.bf16.mxu0 0
    %499 = vmatpush2.bf16.msra.mxu0 0
    %500 = vmatprep.mubr.bf16.mxu0 0
    %501 = vmatmul.mubr.bf16.gmra.mxu0 %v356
    %v502 = vpop.f32.mrf.mxu0
    %v503 = vadd.f32 0.0, %v502
    %v504 = vpop.f32.mrf.mxu0
    %v505 = vpop.f32.mrf.mxu0
    %v506 = vadd.f32 0.0, %v505
    %v507 = vpop.f32.mrf.mxu0
    %508 = vmatprep.mubr.bf16.mxu0 0
    %509 = vmatmul.mubr.bf16.gmra.mxu0 %v357
    %v510 = vpop.f32.mrf.mxu0
    %v511 = vadd.f32 0.0, %v510
    %v512 = vpop.f32.mrf.mxu0
    %v513 = vpop.f32.mrf.mxu0
    %v514 = vadd.f32 0.0, %v513
    %v515 = vpop.f32.mrf.mxu0
    %516 = vmatprep.mubr.bf16.mxu0 0
    %517 = vmatmul.mubr.bf16.gmra.mxu0 %v358
    %v518 = vpop.f32.mrf.mxu0
    %v519 = vadd.f32 0.0, %v518
    %v520 = vpop.f32.mrf.mxu0
    %v521 = vpop.f32.mrf.mxu0
    %v522 = vadd.f32 0.0, %v521
    %v523 = vpop.f32.mrf.mxu0
    %524 = vmatprep.mubr.bf16.mxu0 0
    %525 = vmatmul.mubr.bf16.gmra.mxu0 %v359
    %v526 = vpop.f32.mrf.mxu0
    %v527 = vadd.f32 0.0, %v526
    %v528 = vpop.f32.mrf.mxu0
    %v529 = vpop.f32.mrf.mxu0
    %v530 = vadd.f32 0.0, %v529
    %v531 = vpop.f32.mrf.mxu0
    %532 = vmatprep.mubr.bf16.mxu0 0
    %533 = vmatmul.mubr.bf16.gmra.mxu0 %v360
    %v534 = vpop.f32.mrf.mxu0
    %v535 = vadd.f32 0.0, %v534
    %v536 = vpop.f32.mrf.mxu0
    %v537 = vpop.f32.mrf.mxu0
    %v538 = vadd.f32 0.0, %v537
    %v539 = vpop.f32.mrf.mxu0
    %540 = vmatprep.mubr.bf16.mxu0 0
    %541 = vmatmul.mubr.bf16.gmra.mxu0 %v361
    %v542 = vpop.f32.mrf.mxu0
    %v543 = vadd.f32 0.0, %v542
    %v544 = vpop.f32.mrf.mxu0
    %v545 = vpop.f32.mrf.mxu0
    %v546 = vadd.f32 0.0, %v545
    %v547 = vpop.f32.mrf.mxu0
    %548 = vmatprep.mubr.bf16.mxu0 0
    %549 = vmatmul.mubr.bf16.gmra.mxu0 %v362
    %v550 = vpop.f32.mrf.mxu0
    %v551 = vadd.f32 0.0, %v550
    %v552 = vpop.f32.mrf.mxu0
    %v553 = vpop.f32.mrf.mxu0
    %v554 = vadd.f32 0.0, %v553
    %v555 = vpop.f32.mrf.mxu0
    %556 = vmatprep.mubr.bf16.mxu0 0
    %557 = vmatmul.mubr.bf16.gmra.mxu0 %v363
    %v558 = vpop.f32.mrf.mxu0
    %v559 = vadd.f32 0.0, %v558
    %v560 = vpop.f32.mrf.mxu0
    %v561 = vpop.f32.mrf.mxu0
    %v562 = vadd.f32 0.0, %v561
    %v563 = vpop.f32.mrf.mxu0
    %564 = vmatprep.mubr.bf16.mxu0 0
    %565 = vmatmul.mubr.bf16.gmra.mxu0 %v364
    %v566 = vpop.f32.mrf.mxu0
    %v567 = vadd.f32 0.0, %v566
    %v568 = vpop.f32.mrf.mxu0
    %v569 = vpop.f32.mrf.mxu0
    %v570 = vadd.f32 0.0, %v569
    %v571 = vpop.f32.mrf.mxu0
    %572 = vmatprep.mubr.bf16.mxu0 0
    %573 = vmatmul.mubr.bf16.gmra.mxu0 %v365
    %v574 = vpop.f32.mrf.mxu0
    %v575 = vadd.f32 0.0, %v574
    %v576 = vpop.f32.mrf.mxu0
    %v577 = vpop.f32.mrf.mxu0
    %v578 = vadd.f32 0.0, %v577
    %v579 = vpop.f32.mrf.mxu0
    %580 = vmatprep.mubr.bf16.mxu0 0
    %581 = vmatmul.mubr.bf16.gmra.mxu0 %v366
    %v582 = vpop.f32.mrf.mxu0
    %v583 = vadd.f32 0.0, %v582
    %v584 = vpop.f32.mrf.mxu0
    %v585 = vpop.f32.mrf.mxu0
    %v586 = vadd.f32 0.0, %v585
    %v587 = vpop.f32.mrf.mxu0
    %588 = vmatprep.mubr.bf16.mxu0 0
    %589 = vmatmul.mubr.bf16.gmra.mxu0 %v367
    %v590 = vpop.f32.mrf.mxu0
    %v591 = vadd.f32 0.0, %v590
    %v592 = vpop.f32.mrf.mxu0
    %v593 = vpop.f32.mrf.mxu0
    %v594 = vadd.f32 0.0, %v593
    %v595 = vpop.f32.mrf.mxu0
    %596 = vmatprep.mubr.bf16.mxu0 0
    %597 = vmatmul.mubr.bf16.gmra.mxu0 %v368
    %v598 = vpop.f32.mrf.mxu0
    %v599 = vadd.f32 0.0, %v598
    %v600 = vpop.f32.mrf.mxu0
    %v601 = vpop.f32.mrf.mxu0
    %v602 = vadd.f32 0.0, %v601
    %v603 = vpop.f32.mrf.mxu0
    %604 = vmatprep.mubr.bf16.mxu0 0
    %605 = vmatmul.mubr.bf16.gmra.mxu0 %v369
    %v606 = vpop.f32.mrf.mxu0
    %v607 = vadd.f32 0.0, %v606
    %v608 = vpop.f32.mrf.mxu0
    %v609 = vpop.f32.mrf.mxu0
    %v610 = vadd.f32 0.0, %v609
    %v611 = vpop.f32.mrf.mxu0
    %612 = vmatprep.mubr.bf16.mxu0 0
    %613 = vmatmul.mubr.bf16.gmra.mxu0 %v370
    %v614 = vpop.f32.mrf.mxu0
    %v615 = vadd.f32 0.0, %v614
    %v616 = vpop.f32.mrf.mxu0
    %v617 = vpop.f32.mrf.mxu0
    %v618 = vadd.f32 0.0, %v617
    %v619 = vpop.f32.mrf.mxu0
    %620 = vmatprep.mubr.bf16.mxu0 0
    %621 = vmatmul.mubr.bf16.gmra.mxu0 %v371
    %v622 = vpop.f32.mrf.mxu0
    %v623 = vadd.f32 0.0, %v622
    %v624 = vpop.f32.mrf.mxu0
    %v625 = vpop.f32.mrf.mxu0
    %v626 = vadd.f32 0.0, %v625
    %v627 = vpop.f32.mrf.mxu0
    %628 = vmatprep.mubr.bf16.mxu0 0
    %629 = vmatmul.mubr.bf16.gmra.mxu0 %v372
    %v630 = vpop.f32.mrf.mxu0
    %v631 = vadd.f32 0.0, %v630
    %v632 = vpop.f32.mrf.mxu0
    %v633 = vpop.f32.mrf.mxu0
    %v634 = vadd.f32 0.0, %v633
    %v635 = vpop.f32.mrf.mxu0
    %636 = vmatprep.mubr.bf16.mxu0 0
    %637 = vmatmul.mubr.bf16.gmra.mxu0 %v373
    %v638 = vpop.f32.mrf.mxu0
    %v639 = vadd.f32 0.0, %v638
    %v640 = vpop.f32.mrf.mxu0
    %v641 = vpop.f32.mrf.mxu0
    %v642 = vadd.f32 0.0, %v641
    %v643 = vpop.f32.mrf.mxu0
    %644 = vmatprep.mubr.bf16.mxu0 0
    %645 = vmatmul.mubr.bf16.gmra.mxu0 %v374
    %v646 = vpop.f32.mrf.mxu0
    %v647 = vadd.f32 0.0, %v646
    %v648 = vpop.f32.mrf.mxu0
    %v649 = vpop.f32.mrf.mxu0
    %v650 = vadd.f32 0.0, %v649
    %v651 = vpop.f32.mrf.mxu0
    %652 = vmatprep.mubr.bf16.mxu0 0
    %653 = vmatmul.mubr.bf16.gmra.mxu0 %v375
    %v654 = vpop.f32.mrf.mxu0
    %v655 = vadd.f32 0.0, %v654
    %v656 = vpop.f32.mrf.mxu0
    %v657 = vpop.f32.mrf.mxu0
    %v658 = vadd.f32 0.0, %v657
    %v659 = vpop.f32.mrf.mxu0
    %660 = vmatprep.mubr.bf16.mxu0 0
    %661 = vmatmul.mubr.bf16.gmra.mxu0 %v376
    %v662 = vpop.f32.mrf.mxu0
    %v663 = vadd.f32 0.0, %v662
    %v664 = vpop.f32.mrf.mxu0
    %v665 = vpop.f32.mrf.mxu0
    %v666 = vadd.f32 0.0, %v665
    %v667 = vpop.f32.mrf.mxu0
    %668 = vmatprep.mubr.bf16.mxu0 0
    %669 = vmatmul.mubr.bf16.gmra.mxu0 %v377
    %v670 = vpop.f32.mrf.mxu0
    %v671 = vadd.f32 0.0, %v670
    %v672 = vpop.f32.mrf.mxu0
    %v673 = vpop.f32.mrf.mxu0
    %v674 = vadd.f32 0.0, %v673
    %v675 = vpop.f32.mrf.mxu0
    %676 = vmatprep.mubr.bf16.mxu0 0
    %677 = vmatmul.mubr.bf16.gmra.mxu0 %v378
    %v678 = vpop.f32.mrf.mxu0
    %v679 = vadd.f32 0.0, %v678
    %v680 = vpop.f32.mrf.mxu0
    %v681 = vpop.f32.mrf.mxu0
    %v682 = vadd.f32 0.0, %v681
    %v683 = vpop.f32.mrf.mxu0
    %684 = vmatprep.mubr.bf16.mxu0 0
    %685 = vmatmul.mubr.bf16.gmra.mxu0 %v379
    %v686 = vpop.f32.mrf.mxu0
    %v687 = vadd.f32 0.0, %v686
    %v688 = vpop.f32.mrf.mxu0
    %v689 = vpop.f32.mrf.mxu0
    %v690 = vadd.f32 0.0, %v689
    %v691 = vpop.f32.mrf.mxu0
    %692 = vmatprep.mubr.bf16.mxu0 0
    %693 = vmatmul.mubr.bf16.gmra.mxu0 %v380
    %v694 = vpop.f32.mrf.mxu0
    %v695 = vadd.f32 0.0, %v694
    %v696 = vpop.f32.mrf.mxu0
    %v697 = vpop.f32.mrf.mxu0
    %v698 = vadd.f32 0.0, %v697
    %v699 = vpop.f32.mrf.mxu0
    %700 = vmatprep.mubr.bf16.mxu0 0
    %701 = vmatmul.mubr.bf16.gmra.mxu0 %v381
    %v702 = vpop.f32.mrf.mxu0
    %v703 = vadd.f32 0.0, %v702
    %v704 = vpop.f32.mrf.mxu0
    %v705 = vpop.f32.mrf.mxu0
    %v706 = vadd.f32 0.0, %v705
    %v707 = vpop.f32.mrf.mxu0
    %708 = vmatprep.mubr.bf16.mxu0 0
    %709 = vmatmul.mubr.bf16.gmra.mxu0 %v382
    %v710 = vpop.f32.mrf.mxu0
    %v711 = vadd.f32 0.0, %v710
    %v712 = vpop.f32.mrf.mxu0
    %v713 = vpop.f32.mrf.mxu0
    %v714 = vadd.f32 0.0, %v713
    %v715 = vpop.f32.mrf.mxu0
    %716 = vmatprep.mubr.bf16.mxu0 0
    %717 = vmatmul.mubr.bf16.gmra.mxu0 %v383
    %v718 = vpop.f32.mrf.mxu0
    %v719 = vadd.f32 0.0, %v718
    %v720 = vpop.f32.mrf.mxu0
    %v721 = vpop.f32.mrf.mxu0
    %v722 = vadd.f32 0.0, %v721
    %v723 = vpop.f32.mrf.mxu0
    %724 = vmatprep.mubr.bf16.mxu0 0
    %725 = vmatmul.mubr.bf16.gmra.mxu0 %v384
    %v726 = vpop.f32.mrf.mxu0
    %v727 = vadd.f32 0.0, %v726
    %v728 = vpop.f32.mrf.mxu0
    %v729 = vpop.f32.mrf.mxu0
    %v730 = vadd.f32 0.0, %v729
    %v731 = vpop.f32.mrf.mxu0
    %732 = vmatprep.mubr.bf16.mxu0 0
    %733 = vmatmul.mubr.bf16.gmra.mxu0 %v385
    %v734 = vpop.f32.mrf.mxu0
    %v735 = vadd.f32 0.0, %v734
    %v736 = vpop.f32.mrf.mxu0
    %v737 = vpop.f32.mrf.mxu0
    %v738 = vadd.f32 0.0, %v737
    %v739 = vpop.f32.mrf.mxu0
    %740 = vmatprep.mubr.bf16.mxu0 0
    %741 = vmatmul.mubr.bf16.gmra.mxu0 %v386
    %v742 = vpop.f32.mrf.mxu0
    %v743 = vadd.f32 0.0, %v742
    %v744 = vpop.f32.mrf.mxu0
    %v745 = vpop.f32.mrf.mxu0
    %v746 = vadd.f32 0.0, %v745
    %v747 = vpop.f32.mrf.mxu0
    %748 = vmatprep.mubr.bf16.mxu0 0
    %749 = vmatmul.mubr.bf16.gmra.mxu0 %v387
    %v750 = vpop.f32.mrf.mxu0
    %v751 = vadd.f32 0.0, %v750
    %v752 = vpop.f32.mrf.mxu0
    %v753 = vpop.f32.mrf.mxu0
    %v754 = vadd.f32 0.0, %v753
    %v755 = vpop.f32.mrf.mxu0
    %756 = vdwg.mxu0
    %v757 = vadd.f32 %v148, %v503
    %v758 = vadd.f32 %v149, %v506
    %v759 = vadd.f32 %v150, %v511
    %v760 = vadd.f32 %v151, %v514
    %v761 = vadd.f32 %v152, %v519
    %v762 = vadd.f32 %v153, %v522
    %v763 = vadd.f32 %v154, %v527
    %v764 = vadd.f32 %v155, %v530
    %v765 = vadd.f32 %v156, %v535
    %v766 = vadd.f32 %v157, %v538
    %v767 = vadd.f32 %v158, %v543
    %v768 = vadd.f32 %v159, %v546
    %v769 = vadd.f32 %v160, %v551
    %v770 = vadd.f32 %v161, %v554
    %v771 = vadd.f32 %v162, %v559
    %v772 = vadd.f32 %v163, %v562
    %v773 = vadd.f32 %v164, %v567
    %v774 = vadd.f32 %v165, %v570
    %v775 = vadd.f32 %v166, %v575
    %v776 = vadd.f32 %v167, %v578
    %v777 = vadd.f32 %v168, %v583
    %v778 = vadd.f32 %v169, %v586
    %v779 = vadd.f32 %v170, %v591
    %v780 = vadd.f32 %v171, %v594
    %v781 = vadd.f32 %v172, %v599
    %v782 = vadd.f32 %v173, %v602
    %v783 = vadd.f32 %v174, %v607
    %v784 = vadd.f32 %v175, %v610
    %v785 = vadd.f32 %v176, %v615
    %v786 = vadd.f32 %v177, %v618
    %v787 = vadd.f32 %v178, %v623
    %v788 = vadd.f32 %v179, %v626
    %v789 = vadd.f32 %v180, %v631
    %v790 = vadd.f32 %v181, %v634
    %v791 = vadd.f32 %v182, %v639
    %v792 = vadd.f32 %v183, %v642
    %v793 = vadd.f32 %v184, %v647
    %v794 = vadd.f32 %v185, %v650
    %v795 = vadd.f32 %v186, %v655
    %v796 = vadd.f32 %v187, %v658
    %v797 = vadd.f32 %v188, %v663
    %v798 = vadd.f32 %v189, %v666
    %v799 = vadd.f32 %v190, %v671
    %v800 = vadd.f32 %v191, %v674
    %v801 = vadd.f32 %v192, %v679
    %v802 = vadd.f32 %v193, %v682
    %v803 = vadd.f32 %v194, %v687
    %v804 = vadd.f32 %v195, %v690
    %v805 = vadd.f32 %v196, %v695
    %v806 = vadd.f32 %v197, %v698
    %v807 = vadd.f32 %v198, %v703
    %v808 = vadd.f32 %v199, %v706
    %v809 = vadd.f32 %v200, %v711
    %v810 = vadd.f32 %v201, %v714
    %v811 = vadd.f32 %v202, %v719
    %v812 = vadd.f32 %v203, %v722
    %v813 = vadd.f32 %v204, %v727
    %v814 = vadd.f32 %v205, %v730
    %v815 = vadd.f32 %v206, %v735
    %v816 = vadd.f32 %v207, %v738
    %v817 = vadd.f32 %v208, %v743
    %v818 = vadd.f32 %v209, %v746
    %v819 = vadd.f32 %v210, %v751
    %v820 = vadd.f32 %v211, %v754
    %821 = vst [vmem:[#allocation2] sm:$0xff] %v757
    %822 = vst [vmem:[#allocation2 + $0x8] sm:$0xff] %v758
    %823 = vst [vmem:[#allocation2 + $0x10] sm:$0xff] %v759
    %824 = vst [vmem:[#allocation2 + $0x18] sm:$0xff] %v760
    %825 = vst [vmem:[#allocation2 + $0x20] sm:$0xff] %v761
    %826 = vst [vmem:[#allocation2 + $0x28] sm:$0xff] %v762
    %827 = vst [vmem:[#allocation2 + $0x30] sm:$0xff] %v763
    %828 = vst [vmem:[#allocation2 + $0x38] sm:$0xff] %v764
    %829 = vst [vmem:[#allocation2 + $0x40] sm:$0xff] %v765
    %830 = vst [vmem:[#allocation2 + $0x48] sm:$0xff] %v766
    %831 = vst [vmem:[#allocation2 + $0x50] sm:$0xff] %v767
    %832 = vst [vmem:[#allocation2 + $0x58] sm:$0xff] %v768
    %833 = vst [vmem:[#allocation2 + $0x60] sm:$0xff] %v769
    %834 = vst [vmem:[#allocation2 + $0x68] sm:$0xff] %v770
    %835 = vst [vmem:[#allocation2 + $0x70] sm:$0xff] %v771
    %836 = vst [vmem:[#allocation2 + $0x78] sm:$0xff] %v772
    %837 = vst [vmem:[#allocation2 + $0x80] sm:$0xff] %v773
    %838 = vst [vmem:[#allocation2 + $0x88] sm:$0xff] %v774
    %839 = vst [vmem:[#allocation2 + $0x90] sm:$0xff] %v775
    %840 = vst [vmem:[#allocation2 + $0x98] sm:$0xff] %v776
    %841 = vst [vmem:[#allocation2 + $0xa0] sm:$0xff] %v777
    %842 = vst [vmem:[#allocation2 + $0xa8] sm:$0xff] %v778
    %843 = vst [vmem:[#allocation2 + $0xb0] sm:$0xff] %v779
    %844 = vst [vmem:[#allocation2 + $0xb8] sm:$0xff] %v780
    %845 = vst [vmem:[#allocation2 + $0xc0] sm:$0xff] %v781
    %846 = vst [vmem:[#allocation2 + $0xc8] sm:$0xff] %v782
    %847 = vst [vmem:[#allocation2 + $0xd0] sm:$0xff] %v783
    %848 = vst [vmem:[#allocation2 + $0xd8] sm:$0xff] %v784
    %849 = vst [vmem:[#allocation2 + $0xe0] sm:$0xff] %v785
    %850 = vst [vmem:[#allocation2 + $0xe8] sm:$0xff] %v786
    %851 = vst [vmem:[#allocation2 + $0xf0] sm:$0xff] %v787
    %852 = vst [vmem:[#allocation2 + $0xf8] sm:$0xff] %v788
    %853 = vst [vmem:[#allocation2 + $0x100] sm:$0xff] %v789
    %854 = vst [vmem:[#allocation2 + $0x108] sm:$0xff] %v790
    %855 = vst [vmem:[#allocation2 + $0x110] sm:$0xff] %v791
    %856 = vst [vmem:[#allocation2 + $0x118] sm:$0xff] %v792
    %857 = vst [vmem:[#allocation2 + $0x120] sm:$0xff] %v793
    %858 = vst [vmem:[#allocation2 + $0x128] sm:$0xff] %v794
    %859 = vst [vmem:[#allocation2 + $0x130] sm:$0xff] %v795
    %860 = vst [vmem:[#allocation2 + $0x138] sm:$0xff] %v796
    %861 = vst [vmem:[#allocation2 + $0x140] sm:$0xff] %v797
    %862 = vst [vmem:[#allocation2 + $0x148] sm:$0xff] %v798
    %863 = vst [vmem:[#allocation2 + $0x150] sm:$0xff] %v799
    %864 = vst [vmem:[#allocation2 + $0x158] sm:$0xff] %v800
    %865 = vst [vmem:[#allocation2 + $0x160] sm:$0xff] %v801
    %866 = vst [vmem:[#allocation2 + $0x168] sm:$0xff] %v802
    %867 = vst [vmem:[#allocation2 + $0x170] sm:$0xff] %v803
    %868 = vst [vmem:[#allocation2 + $0x178] sm:$0xff] %v804
    %869 = vst [vmem:[#allocation2 + $0x180] sm:$0xff] %v805
    %870 = vst [vmem:[#allocation2 + $0x188] sm:$0xff] %v806
    %871 = vst [vmem:[#allocation2 + $0x190] sm:$0xff] %v807
    %872 = vst [vmem:[#allocation2 + $0x198] sm:$0xff] %v808
    %873 = vst [vmem:[#allocation2 + $0x1a0] sm:$0xff] %v809
    %874 = vst [vmem:[#allocation2 + $0x1a8] sm:$0xff] %v810
    %875 = vst [vmem:[#allocation2 + $0x1b0] sm:$0xff] %v811
    %876 = vst [vmem:[#allocation2 + $0x1b8] sm:$0xff] %v812
    %877 = vst [vmem:[#allocation2 + $0x1c0] sm:$0xff] %v813
    %878 = vst [vmem:[#allocation2 + $0x1c8] sm:$0xff] %v814
    %879 = vst [vmem:[#allocation2 + $0x1d0] sm:$0xff] %v815
    %880 = vst [vmem:[#allocation2 + $0x1d8] sm:$0xff] %v816
    %881 = vst [vmem:[#allocation2 + $0x1e0] sm:$0xff] %v817
    %882 = vst [vmem:[#allocation2 + $0x1e8] sm:$0xff] %v818
    %883 = vst [vmem:[#allocation2 + $0x1f0] sm:$0xff] %v819
    %884 = vst [vmem:[#allocation2 + $0x1f8] sm:$0xff] %v820
    // Predicated region
    $region14: #{_conv1x1_unit.1} parent=1 // pred_check
      %p885 = pneg %p16
    $region15: #{_conv1x1_unit.1} parent=1 // pred_check_branch
      %887 = sbr.rel (%p885) target = $region17
    $region16: #{_conv1x1_unit.1} parent=1 // pred_region
      %v888 = vld [vmem:[#allocation2] sm:$0xff]
      %v889 = vld [vmem:[#allocation2 + $0x8] sm:$0xff]
      %v890 = vld [vmem:[#allocation2 + $0x10] sm:$0xff]
      %v891 = vld [vmem:[#allocation2 + $0x18] sm:$0xff]
      %v892 = vld [vmem:[#allocation2 + $0x20] sm:$0xff]
      %v893 = vld [vmem:[#allocation2 + $0x28] sm:$0xff]
      %v894 = vld [vmem:[#allocation2 + $0x30] sm:$0xff]
      %v895 = vld [vmem:[#allocation2 + $0x38] sm:$0xff]
      %v896 = vld [vmem:[#allocation2 + $0x40] sm:$0xff]
      %v897 = vld [vmem:[#allocation2 + $0x48] sm:$0xff]
      %v898 = vld [vmem:[#allocation2 + $0x50] sm:$0xff]
      %v899 = vld [vmem:[#allocation2 + $0x58] sm:$0xff]
      %v900 = vld [vmem:[#allocation2 + $0x60] sm:$0xff]
      %v901 = vld [vmem:[#allocation2 + $0x68] sm:$0xff]
      %v902 = vld [vmem:[#allocation2 + $0x70] sm:$0xff]
      %v903 = vld [vmem:[#allocation2 + $0x78] sm:$0xff]
      %v904 = vld [vmem:[#allocation2 + $0x80] sm:$0xff]
      %v905 = vld [vmem:[#allocation2 + $0x88] sm:$0xff]
      %v906 = vld [vmem:[#allocation2 + $0x90] sm:$0xff]
      %v907 = vld [vmem:[#allocation2 + $0x98] sm:$0xff]
      %v908 = vld [vmem:[#allocation2 + $0xa0] sm:$0xff]
      %v909 = vld [vmem:[#allocation2 + $0xa8] sm:$0xff]
      %v910 = vld [vmem:[#allocation2 + $0xb0] sm:$0xff]
      %v911 = vld [vmem:[#allocation2 + $0xb8] sm:$0xff]
      %v912 = vld [vmem:[#allocation2 + $0xc0] sm:$0xff]
      %v913 = vld [vmem:[#allocation2 + $0xc8] sm:$0xff]
      %v914 = vld [vmem:[#allocation2 + $0xd0] sm:$0xff]
      %v915 = vld [vmem:[#allocation2 + $0xd8] sm:$0xff]
      %v916 = vld [vmem:[#allocation2 + $0xe0] sm:$0xff]
      %v917 = vld [vmem:[#allocation2 + $0xe8] sm:$0xff]
      %v918 = vld [vmem:[#allocation2 + $0xf0] sm:$0xff]
      %v919 = vld [vmem:[#allocation2 + $0xf8] sm:$0xff]
      %v920 = vld [vmem:[#allocation2 + $0x100] sm:$0xff]
      %v921 = vld [vmem:[#allocation2 + $0x108] sm:$0xff]
      %v922 = vld [vmem:[#allocation2 + $0x110] sm:$0xff]
      %v923 = vld [vmem:[#allocation2 + $0x118] sm:$0xff]
      %v924 = vld [vmem:[#allocation2 + $0x120] sm:$0xff]
      %v925 = vld [vmem:[#allocation2 + $0x128] sm:$0xff]
      %v926 = vld [vmem:[#allocation2 + $0x130] sm:$0xff]
      %v927 = vld [vmem:[#allocation2 + $0x138] sm:$0xff]
      %v928 = vld [vmem:[#allocation2 + $0x140] sm:$0xff]
      %v929 = vld [vmem:[#allocation2 + $0x148] sm:$0xff]
      %v930 = vld [vmem:[#allocation2 + $0x150] sm:$0xff]
      %v931 = vld [vmem:[#allocation2 + $0x158] sm:$0xff]
      %v932 = vld [vmem:[#allocation2 + $0x160] sm:$0xff]
      %v933 = vld [vmem:[#allocation2 + $0x168] sm:$0xff]
      %v934 = vld [vmem:[#allocation2 + $0x170] sm:$0xff]
      %v935 = vld [vmem:[#allocation2 + $0x178] sm:$0xff]
      %v936 = vld [vmem:[#allocation2 + $0x180] sm:$0xff]
      %v937 = vld [vmem:[#allocation2 + $0x188] sm:$0xff]
      %v938 = vld [vmem:[#allocation2 + $0x190] sm:$0xff]
      %v939 = vld [vmem:[#allocation2 + $0x198] sm:$0xff]
      %v940 = vld [vmem:[#allocation2 + $0x1a0] sm:$0xff]
      %v941 = vld [vmem:[#allocation2 + $0x1a8] sm:$0xff]
      %v942 = vld [vmem:[#allocation2 + $0x1b0] sm:$0xff]
      %v943 = vld [vmem:[#allocation2 + $0x1b8] sm:$0xff]
      %v944 = vld [vmem:[#allocation2 + $0x1c0] sm:$0xff]
      %v945 = vld [vmem:[#allocation2 + $0x1c8] sm:$0xff]
      %v946 = vld [vmem:[#allocation2 + $0x1d0] sm:$0xff]
      %v947 = vld [vmem:[#allocation2 + $0x1d8] sm:$0xff]
      %v948 = vld [vmem:[#allocation2 + $0x1e0] sm:$0xff]
      %v949 = vld [vmem:[#allocation2 + $0x1e8] sm:$0xff]
      %v950 = vld [vmem:[#allocation2 + $0x1f0] sm:$0xff]
      %v951 = vld [vmem:[#allocation2 + $0x1f8] sm:$0xff]
      %v952 = vpack.c.bf16 %v889, %v888
      %v953 = vpack.c.bf16 %v891, %v890
      %v954 = vpack.c.bf16 %v893, %v892
      %v955 = vpack.c.bf16 %v895, %v894
      %v956 = vpack.c.bf16 %v897, %v896
      %v957 = vpack.c.bf16 %v899, %v898
      %v958 = vpack.c.bf16 %v901, %v900
      %v959 = vpack.c.bf16 %v903, %v902
      %v960 = vpack.c.bf16 %v905, %v904
      %v961 = vpack.c.bf16 %v907, %v906
      %v962 = vpack.c.bf16 %v909, %v908
      %v963 = vpack.c.bf16 %v911, %v910
      %v964 = vpack.c.bf16 %v913, %v912
      %v965 = vpack.c.bf16 %v915, %v914
      %v966 = vpack.c.bf16 %v917, %v916
      %v967 = vpack.c.bf16 %v919, %v918
      %v968 = vpack.c.bf16 %v921, %v920
      %v969 = vpack.c.bf16 %v923, %v922
      %v970 = vpack.c.bf16 %v925, %v924
      %v971 = vpack.c.bf16 %v927, %v926
      %v972 = vpack.c.bf16 %v929, %v928
      %v973 = vpack.c.bf16 %v931, %v930
      %v974 = vpack.c.bf16 %v933, %v932
      %v975 = vpack.c.bf16 %v935, %v934
      %v976 = vpack.c.bf16 %v937, %v936
      %v977 = vpack.c.bf16 %v939, %v938
      %v978 = vpack.c.bf16 %v941, %v940
      %v979 = vpack.c.bf16 %v943, %v942
      %v980 = vpack.c.bf16 %v945, %v944
      %v981 = vpack.c.bf16 %v947, %v946
      %v982 = vpack.c.bf16 %v949, %v948
      %v983 = vpack.c.bf16 %v951, %v950
      %v1016 = vunpack.c.l.b16 %v952
      %v1017 = vunpack.c.h.b16 %v952
      %v1018 = vunpack.c.l.b16 %v953
      %v1019 = vunpack.c.h.b16 %v953
      %v1020 = vunpack.c.l.b16 %v954
      %v1021 = vunpack.c.h.b16 %v954
      %v1022 = vunpack.c.l.b16 %v955
      %v1023 = vunpack.c.h.b16 %v955
      %v1024 = vunpack.c.l.b16 %v956
      %v1025 = vunpack.c.h.b16 %v956
      %v1026 = vunpack.c.l.b16 %v957
      %v1027 = vunpack.c.h.b16 %v957
      %v1028 = vunpack.c.l.b16 %v958
      %v1029 = vunpack.c.h.b16 %v958
      %v1030 = vunpack.c.l.b16 %v959
      %v1031 = vunpack.c.h.b16 %v959
      %v1032 = vunpack.c.l.b16 %v960
      %v1033 = vunpack.c.h.b16 %v960
      %v1034 = vunpack.c.l.b16 %v961
      %v1035 = vunpack.c.h.b16 %v961
      %v1036 = vunpack.c.l.b16 %v962
      %v1037 = vunpack.c.h.b16 %v962
      %v1038 = vunpack.c.l.b16 %v963
      %v1039 = vunpack.c.h.b16 %v963
      %v1040 = vunpack.c.l.b16 %v964
      %v1041 = vunpack.c.h.b16 %v964
      %v1042 = vunpack.c.l.b16 %v965
      %v1043 = vunpack.c.h.b16 %v965
      %v1044 = vunpack.c.l.b16 %v966
      %v1045 = vunpack.c.h.b16 %v966
      %v1046 = vunpack.c.l.b16 %v967
      %v1047 = vunpack.c.h.b16 %v967
      %v1048 = vunpack.c.l.b16 %v968
      %v1049 = vunpack.c.h.b16 %v968
      %v1050 = vunpack.c.l.b16 %v969
      %v1051 = vunpack.c.h.b16 %v969
      %v1052 = vunpack.c.l.b16 %v970
      %v1053 = vunpack.c.h.b16 %v970
      %v1054 = vunpack.c.l.b16 %v971
      %v1055 = vunpack.c.h.b16 %v971
      %v1056 = vunpack.c.l.b16 %v972
      %v1057 = vunpack.c.h.b16 %v972
      %v1058 = vunpack.c.l.b16 %v973
      %v1059 = vunpack.c.h.b16 %v973
      %v1060 = vunpack.c.l.b16 %v974
      %v1061 = vunpack.c.h.b16 %v974
      %v1062 = vunpack.c.l.b16 %v975
      %v1063 = vunpack.c.h.b16 %v975
      %v1064 = vunpack.c.l.b16 %v976
      %v1065 = vunpack.c.h.b16 %v976
      %v1066 = vunpack.c.l.b16 %v977
      %v1067 = vunpack.c.h.b16 %v977
      %v1068 = vunpack.c.l.b16 %v978
      %v1069 = vunpack.c.h.b16 %v978
      %v1070 = vunpack.c.l.b16 %v979
      %v1071 = vunpack.c.h.b16 %v979
      %v1072 = vunpack.c.l.b16 %v980
      %v1073 = vunpack.c.h.b16 %v980
      %v1074 = vunpack.c.l.b16 %v981
      %v1075 = vunpack.c.h.b16 %v981
      %v1076 = vunpack.c.l.b16 %v982
      %v1077 = vunpack.c.h.b16 %v982
      %v1078 = vunpack.c.l.b16 %v983
      %v1079 = vunpack.c.h.b16 %v983
      %v1080 = vpack.c.b16 %v1016, %v1016
      %v1081 = vpack.c.b16 %v1017, %v1017
      %v1082 = vpack.c.b16 %v1018, %v1018
      %v1083 = vpack.c.b16 %v1019, %v1019
      %v1084 = vpack.c.b16 %v1020, %v1020
      %v1085 = vpack.c.b16 %v1021, %v1021
      %v1086 = vpack.c.b16 %v1022, %v1022
      %v1087 = vpack.c.b16 %v1023, %v1023
      %v1088 = vpack.c.b16 %v1024, %v1024
      %v1089 = vpack.c.b16 %v1025, %v1025
      %v1090 = vpack.c.b16 %v1026, %v1026
      %v1091 = vpack.c.b16 %v1027, %v1027
      %v1092 = vpack.c.b16 %v1028, %v1028
      %v1093 = vpack.c.b16 %v1029, %v1029
      %v1094 = vpack.c.b16 %v1030, %v1030
      %v1095 = vpack.c.b16 %v1031, %v1031
      %v1096 = vpack.c.b16 %v1032, %v1032
      %v1097 = vpack.c.b16 %v1033, %v1033
      %v1098 = vpack.c.b16 %v1034, %v1034
      %v1099 = vpack.c.b16 %v1035, %v1035
      %v1100 = vpack.c.b16 %v1036, %v1036
      %v1101 = vpack.c.b16 %v1037, %v1037
      %v1102 = vpack.c.b16 %v1038, %v1038
      %v1103 = vpack.c.b16 %v1039, %v1039
      %v1104 = vpack.c.b16 %v1040, %v1040
      %v1105 = vpack.c.b16 %v1041, %v1041
      %v1106 = vpack.c.b16 %v1042, %v1042
      %v1107 = vpack.c.b16 %v1043, %v1043
      %v1108 = vpack.c.b16 %v1044, %v1044
      %v1109 = vpack.c.b16 %v1045, %v1045
      %v1110 = vpack.c.b16 %v1046, %v1046
      %v1111 = vpack.c.b16 %v1047, %v1047
      %v1112 = vpack.c.b16 %v1048, %v1048
      %v1113 = vpack.c.b16 %v1049, %v1049
      %v1114 = vpack.c.b16 %v1050, %v1050
      %v1115 = vpack.c.b16 %v1051, %v1051
      %v1116 = vpack.c.b16 %v1052, %v1052
      %v1117 = vpack.c.b16 %v1053, %v1053
      %v1118 = vpack.c.b16 %v1054, %v1054
      %v1119 = vpack.c.b16 %v1055, %v1055
      %v1120 = vpack.c.b16 %v1056, %v1056
      %v1121 = vpack.c.b16 %v1057, %v1057
      %v1122 = vpack.c.b16 %v1058, %v1058
      %v1123 = vpack.c.b16 %v1059, %v1059
      %v1124 = vpack.c.b16 %v1060, %v1060
      %v1125 = vpack.c.b16 %v1061, %v1061
      %v1126 = vpack.c.b16 %v1062, %v1062
      %v1127 = vpack.c.b16 %v1063, %v1063
      %v1128 = vpack.c.b16 %v1064, %v1064
      %v1129 = vpack.c.b16 %v1065, %v1065
      %v1130 = vpack.c.b16 %v1066, %v1066
      %v1131 = vpack.c.b16 %v1067, %v1067
      %v1132 = vpack.c.b16 %v1068, %v1068
      %v1133 = vpack.c.b16 %v1069, %v1069
      %v1134 = vpack.c.b16 %v1070, %v1070
      %v1135 = vpack.c.b16 %v1071, %v1071
      %v1136 = vpack.c.b16 %v1072, %v1072
      %v1137 = vpack.c.b16 %v1073, %v1073
      %v1138 = vpack.c.b16 %v1074, %v1074
      %v1139 = vpack.c.b16 %v1075, %v1075
      %v1140 = vpack.c.b16 %v1076, %v1076
      %v1141 = vpack.c.b16 %v1077, %v1077
      %v1142 = vpack.c.b16 %v1078, %v1078
      %v1143 = vpack.c.b16 %v1079, %v1079
      %1208 = vst [vmem:[#allocation3] sm:$0xf] %v1080
      %1209 = vst [vmem:[#allocation3 + $0x4] sm:$0xf] %v1081
      %1210 = vst [vmem:[#allocation3 + $0x8] sm:$0xf] %v1082
      %1211 = vst [vmem:[#allocation3 + $0xc] sm:$0xf] %v1083
      %1212 = vst [vmem:[#allocation3 + $0x10] sm:$0xf] %v1084
      %1213 = vst [vmem:[#allocation3 + $0x14] sm:$0xf] %v1085
      %1214 = vst [vmem:[#allocation3 + $0x18] sm:$0xf] %v1086
      %1215 = vst [vmem:[#allocation3 + $0x1c] sm:$0xf] %v1087
      %1216 = vst [vmem:[#allocation3 + $0x20] sm:$0xf] %v1088
      %1217 = vst [vmem:[#allocation3 + $0x24] sm:$0xf] %v1089
      %1218 = vst [vmem:[#allocation3 + $0x28] sm:$0xf] %v1090
      %1219 = vst [vmem:[#allocation3 + $0x2c] sm:$0xf] %v1091
      %1220 = vst [vmem:[#allocation3 + $0x30] sm:$0xf] %v1092
      %1221 = vst [vmem:[#allocation3 + $0x34] sm:$0xf] %v1093
      %1222 = vst [vmem:[#allocation3 + $0x38] sm:$0xf] %v1094
      %1223 = vst [vmem:[#allocation3 + $0x3c] sm:$0xf] %v1095
      %1224 = vst [vmem:[#allocation3 + $0x40] sm:$0xf] %v1096
      %1225 = vst [vmem:[#allocation3 + $0x44] sm:$0xf] %v1097
      %1226 = vst [vmem:[#allocation3 + $0x48] sm:$0xf] %v1098
      %1227 = vst [vmem:[#allocation3 + $0x4c] sm:$0xf] %v1099
      %1228 = vst [vmem:[#allocation3 + $0x50] sm:$0xf] %v1100
      %1229 = vst [vmem:[#allocation3 + $0x54] sm:$0xf] %v1101
      %1230 = vst [vmem:[#allocation3 + $0x58] sm:$0xf] %v1102
      %1231 = vst [vmem:[#allocation3 + $0x5c] sm:$0xf] %v1103
      %1232 = vst [vmem:[#allocation3 + $0x60] sm:$0xf] %v1104
      %1233 = vst [vmem:[#allocation3 + $0x64] sm:$0xf] %v1105
      %1234 = vst [vmem:[#allocation3 + $0x68] sm:$0xf] %v1106
      %1235 = vst [vmem:[#allocation3 + $0x6c] sm:$0xf] %v1107
      %1236 = vst [vmem:[#allocation3 + $0x70] sm:$0xf] %v1108
      %1237 = vst [vmem:[#allocation3 + $0x74] sm:$0xf] %v1109
      %1238 = vst [vmem:[#allocation3 + $0x78] sm:$0xf] %v1110
      %1239 = vst [vmem:[#allocation3 + $0x7c] sm:$0xf] %v1111
      %1240 = vst [vmem:[#allocation3 + $0x80] sm:$0xf] %v1112
      %1241 = vst [vmem:[#allocation3 + $0x84] sm:$0xf] %v1113
      %1242 = vst [vmem:[#allocation3 + $0x88] sm:$0xf] %v1114
      %1243 = vst [vmem:[#allocation3 + $0x8c] sm:$0xf] %v1115
      %1244 = vst [vmem:[#allocation3 + $0x90] sm:$0xf] %v1116
      %1245 = vst [vmem:[#allocation3 + $0x94] sm:$0xf] %v1117
      %1246 = vst [vmem:[#allocation3 + $0x98] sm:$0xf] %v1118
      %1247 = vst [vmem:[#allocation3 + $0x9c] sm:$0xf] %v1119
      %1248 = vst [vmem:[#allocation3 + $0xa0] sm:$0xf] %v1120
      %1249 = vst [vmem:[#allocation3 + $0xa4] sm:$0xf] %v1121
      %1250 = vst [vmem:[#allocation3 + $0xa8] sm:$0xf] %v1122
      %1251 = vst [vmem:[#allocation3 + $0xac] sm:$0xf] %v1123
      %1252 = vst [vmem:[#allocation3 + $0xb0] sm:$0xf] %v1124
      %1253 = vst [vmem:[#allocation3 + $0xb4] sm:$0xf] %v1125
      %1254 = vst [vmem:[#allocation3 + $0xb8] sm:$0xf] %v1126
      %1255 = vst [vmem:[#allocation3 + $0xbc] sm:$0xf] %v1127
      %1256 = vst [vmem:[#allocation3 + $0xc0] sm:$0xf] %v1128
      %1257 = vst [vmem:[#allocation3 + $0xc4] sm:$0xf] %v1129
      %1258 = vst [vmem:[#allocation3 + $0xc8] sm:$0xf] %v1130
      %1259 = vst [vmem:[#allocation3 + $0xcc] sm:$0xf] %v1131
      %1260 = vst [vmem:[#allocation3 + $0xd0] sm:$0xf] %v1132
      %1261 = vst [vmem:[#allocation3 + $0xd4] sm:$0xf] %v1133
      %1262 = vst [vmem:[#allocation3 + $0xd8] sm:$0xf] %v1134
      %1263 = vst [vmem:[#allocation3 + $0xdc] sm:$0xf] %v1135
      %1264 = vst [vmem:[#allocation3 + $0xe0] sm:$0xf] %v1136
      %1265 = vst [vmem:[#allocation3 + $0xe4] sm:$0xf] %v1137
      %1266 = vst [vmem:[#allocation3 + $0xe8] sm:$0xf] %v1138
      %1267 = vst [vmem:[#allocation3 + $0xec] sm:$0xf] %v1139
      %1268 = vst [vmem:[#allocation3 + $0xf0] sm:$0xf] %v1140
      %1269 = vst [vmem:[#allocation3 + $0xf4] sm:$0xf] %v1141
      %1270 = vst [vmem:[#allocation3 + $0xf8] sm:$0xf] %v1142
      %1271 = vst [vmem:[#allocation3 + $0xfc] sm:$0xf] %v1143
      %v1272 = vadd.f32 %v888, %v889
      %v1273 = vadd.f32 %v1272, %v890
      %v1274 = vadd.f32 %v1273, %v891
      %v1275 = vadd.f32 %v1274, %v892
      %v1276 = vadd.f32 %v1275, %v893
      %v1277 = vadd.f32 %v1276, %v894
      %v1278 = vadd.f32 %v1277, %v895
      %v1279 = vadd.f32 %v1278, %v896
      %v1280 = vadd.f32 %v1279, %v897
      %v1281 = vadd.f32 %v1280, %v898
      %v1282 = vadd.f32 %v1281, %v899
      %v1283 = vadd.f32 %v1282, %v900
      %v1284 = vadd.f32 %v1283, %v901
      %v1285 = vadd.f32 %v1284, %v902
      %v1286 = vadd.f32 %v1285, %v903
      %v1287 = vadd.f32 %v1286, %v904
      %v1288 = vadd.f32 %v1287, %v905
      %v1289 = vadd.f32 %v1288, %v906
      %v1290 = vadd.f32 %v1289, %v907
      %v1291 = vadd.f32 %v1290, %v908
      %v1292 = vadd.f32 %v1291, %v909
      %v1293 = vadd.f32 %v1292, %v910
      %v1294 = vadd.f32 %v1293, %v911
      %v1295 = vadd.f32 %v1294, %v912
      %v1296 = vadd.f32 %v1295, %v913
      %v1297 = vadd.f32 %v1296, %v914
      %v1298 = vadd.f32 %v1297, %v915
      %v1299 = vadd.f32 %v1298, %v916
      %v1300 = vadd.f32 %v1299, %v917
      %v1301 = vadd.f32 %v1300, %v918
      %v1302 = vadd.f32 %v1301, %v919
      %v1303 = vadd.f32 %v1302, %v920
      %v1304 = vadd.f32 %v1303, %v921
      %v1305 = vadd.f32 %v1304, %v922
      %v1306 = vadd.f32 %v1305, %v923
      %v1307 = vadd.f32 %v1306, %v924
      %v1308 = vadd.f32 %v1307, %v925
      %v1309 = vadd.f32 %v1308, %v926
      %v1310 = vadd.f32 %v1309, %v927
      %v1311 = vadd.f32 %v1310, %v928
      %v1312 = vadd.f32 %v1311, %v929
      %v1313 = vadd.f32 %v1312, %v930
      %v1314 = vadd.f32 %v1313, %v931
      %v1315 = vadd.f32 %v1314, %v932
      %v1316 = vadd.f32 %v1315, %v933
      %v1317 = vadd.f32 %v1316, %v934
      %v1318 = vadd.f32 %v1317, %v935
      %v1319 = vadd.f32 %v1318, %v936
      %v1320 = vadd.f32 %v1319, %v937
      %v1321 = vadd.f32 %v1320, %v938
      %v1322 = vadd.f32 %v1321, %v939
      %v1323 = vadd.f32 %v1322, %v940
      %v1324 = vadd.f32 %v1323, %v941
      %v1325 = vadd.f32 %v1324, %v942
      %v1326 = vadd.f32 %v1325, %v943
      %v1327 = vadd.f32 %v1326, %v944
      %v1328 = vadd.f32 %v1327, %v945
      %v1329 = vadd.f32 %v1328, %v946
      %v1330 = vadd.f32 %v1329, %v947
      %v1331 = vadd.f32 %v1330, %v948
      %v1332 = vadd.f32 %v1331, %v949
      %v1333 = vadd.f32 %v1332, %v950
      %v1334 = vadd.f32 %v1333, %v951
      %v1335 = vrot.slane %v1334, 4
      %v1336 = vadd.f32 %v1334, %v1335
      %v1337 = vrot.slane %v1336, 2
      %v1338 = vadd.f32 %v1336, %v1337
      %v1339 = vrot.slane %v1338, 1
      %v1340 = vadd.f32 %v1338, %v1339
      %1341 = vst [vmem:[%s3] sm:$0x1] %v1340
      %v1342 = vmul.f32 %v888, %v888
      %v1343 = vmul.f32 %v889, %v889
      %v1344 = vmul.f32 %v890, %v890
      %v1345 = vmul.f32 %v891, %v891
      %v1346 = vmul.f32 %v892, %v892
      %v1347 = vmul.f32 %v893, %v893
      %v1348 = vmul.f32 %v894, %v894
      %v1349 = vmul.f32 %v895, %v895
      %v1350 = vmul.f32 %v896, %v896
      %v1351 = vmul.f32 %v897, %v897
      %v1352 = vmul.f32 %v898, %v898
      %v1353 = vmul.f32 %v899, %v899
      %v1354 = vmul.f32 %v900, %v900
      %v1355 = vmul.f32 %v901, %v901
      %v1356 = vmul.f32 %v902, %v902
      %v1357 = vmul.f32 %v903, %v903
      %v1358 = vmul.f32 %v904, %v904
      %v1359 = vmul.f32 %v905, %v905
      %v1360 = vmul.f32 %v906, %v906
      %v1361 = vmul.f32 %v907, %v907
      %v1362 = vmul.f32 %v908, %v908
      %v1363 = vmul.f32 %v909, %v909
      %v1364 = vmul.f32 %v910, %v910
      %v1365 = vmul.f32 %v911, %v911
      %v1366 = vmul.f32 %v912, %v912
      %v1367 = vmul.f32 %v913, %v913
      %v1368 = vmul.f32 %v914, %v914
      %v1369 = vmul.f32 %v915, %v915
      %v1370 = vmul.f32 %v916, %v916
      %v1371 = vmul.f32 %v917, %v917
      %v1372 = vmul.f32 %v918, %v918
      %v1373 = vmul.f32 %v919, %v919
      %v1374 = vmul.f32 %v920, %v920
      %v1375 = vmul.f32 %v921, %v921
      %v1376 = vmul.f32 %v922, %v922
      %v1377 = vmul.f32 %v923, %v923
      %v1378 = vmul.f32 %v924, %v924
      %v1379 = vmul.f32 %v925, %v925
      %v1380 = vmul.f32 %v926, %v926
      %v1381 = vmul.f32 %v927, %v927
      %v1382 = vmul.f32 %v928, %v928
      %v1383 = vmul.f32 %v929, %v929
      %v1384 = vmul.f32 %v930, %v930
      %v1385 = vmul.f32 %v931, %v931
      %v1386 = vmul.f32 %v932, %v932
      %v1387 = vmul.f32 %v933, %v933
      %v1388 = vmul.f32 %v934, %v934
      %v1389 = vmul.f32 %v935, %v935
      %v1390 = vmul.f32 %v936, %v936
      %v1391 = vmul.f32 %v937, %v937
      %v1392 = vmul.f32 %v938, %v938
      %v1393 = vmul.f32 %v939, %v939
      %v1394 = vmul.f32 %v940, %v940
      %v1395 = vmul.f32 %v941, %v941
      %v1396 = vmul.f32 %v942, %v942
      %v1397 = vmul.f32 %v943, %v943
      %v1398 = vmul.f32 %v944, %v944
      %v1399 = vmul.f32 %v945, %v945
      %v1400 = vmul.f32 %v946, %v946
      %v1401 = vmul.f32 %v947, %v947
      %v1402 = vmul.f32 %v948, %v948
      %v1403 = vmul.f32 %v949, %v949
      %v1404 = vmul.f32 %v950, %v950
      %v1405 = vmul.f32 %v951, %v951
      %v1406 = vadd.f32 %v1342, %v1343
      %v1407 = vadd.f32 %v1406, %v1344
      %v1408 = vadd.f32 %v1407, %v1345
      %v1409 = vadd.f32 %v1408, %v1346
      %v1410 = vadd.f32 %v1409, %v1347
      %v1411 = vadd.f32 %v1410, %v1348
      %v1412 = vadd.f32 %v1411, %v1349
      %v1413 = vadd.f32 %v1412, %v1350
      %v1414 = vadd.f32 %v1413, %v1351
      %v1415 = vadd.f32 %v1414, %v1352
      %v1416 = vadd.f32 %v1415, %v1353
      %v1417 = vadd.f32 %v1416, %v1354
      %v1418 = vadd.f32 %v1417, %v1355
      %v1419 = vadd.f32 %v1418, %v1356
      %v1420 = vadd.f32 %v1419, %v1357
      %v1421 = vadd.f32 %v1420, %v1358
      %v1422 = vadd.f32 %v1421, %v1359
      %v1423 = vadd.f32 %v1422, %v1360
      %v1424 = vadd.f32 %v1423, %v1361
      %v1425 = vadd.f32 %v1424, %v1362
      %v1426 = vadd.f32 %v1425, %v1363
      %v1427 = vadd.f32 %v1426, %v1364
      %v1428 = vadd.f32 %v1427, %v1365
      %v1429 = vadd.f32 %v1428, %v1366
      %v1430 = vadd.f32 %v1429, %v1367
      %v1431 = vadd.f32 %v1430, %v1368
      %v1432 = vadd.f32 %v1431, %v1369
      %v1433 = vadd.f32 %v1432, %v1370
      %v1434 = vadd.f32 %v1433, %v1371
      %v1435 = vadd.f32 %v1434, %v1372
      %v1436 = vadd.f32 %v1435, %v1373
      %v1437 = vadd.f32 %v1436, %v1374
      %v1438 = vadd.f32 %v1437, %v1375
      %v1439 = vadd.f32 %v1438, %v1376
      %v1440 = vadd.f32 %v1439, %v1377
      %v1441 = vadd.f32 %v1440, %v1378
      %v1442 = vadd.f32 %v1441, %v1379
      %v1443 = vadd.f32 %v1442, %v1380
      %v1444 = vadd.f32 %v1443, %v1381
      %v1445 = vadd.f32 %v1444, %v1382
      %v1446 = vadd.f32 %v1445, %v1383
      %v1447 = vadd.f32 %v1446, %v1384
      %v1448 = vadd.f32 %v1447, %v1385
      %v1449 = vadd.f32 %v1448, %v1386
      %v1450 = vadd.f32 %v1449, %v1387
      %v1451 = vadd.f32 %v1450, %v1388
      %v1452 = vadd.f32 %v1451, %v1389
      %v1453 = vadd.f32 %v1452, %v1390
      %v1454 = vadd.f32 %v1453, %v1391
      %v1455 = vadd.f32 %v1454, %v1392
      %v1456 = vadd.f32 %v1455, %v1393
      %v1457 = vadd.f32 %v1456, %v1394
      %v1458 = vadd.f32 %v1457, %v1395
      %v1459 = vadd.f32 %v1458, %v1396
      %v1460 = vadd.f32 %v1459, %v1397
      %v1461 = vadd.f32 %v1460, %v1398
      %v1462 = vadd.f32 %v1461, %v1399
      %v1463 = vadd.f32 %v1462, %v1400
      %v1464 = vadd.f32 %v1463, %v1401
      %v1465 = vadd.f32 %v1464, %v1402
      %v1466 = vadd.f32 %v1465, %v1403
      %v1467 = vadd.f32 %v1466, %v1404
      %v1468 = vadd.f32 %v1467, %v1405
      %v1469 = vrot.slane %v1468, 4
      %v1470 = vadd.f32 %v1468, %v1469
      %v1471 = vrot.slane %v1470, 2
      %v1472 = vadd.f32 %v1470, %v1471
      %v1473 = vrot.slane %v1472, 1
      %v1474 = vadd.f32 %v1472, %v1473
      %1475 = vst [vmem:[%s4] sm:$0x1] %v1474
    $region17: #{_conv1x1_unit.1} parent=1 // pred_fallthru
      _
    // Predicated region
    $region18: #{_conv1x1_unit.1} parent=1 // pred_check
      _
    $region19: #{_conv1x1_unit.1} parent=1 // pred_check_branch
      %1477 = sbr.rel (0) target = $region21
    $region20: #{_conv1x1_unit.1} parent=1 // pred_region
      %s1479 = ssub.s32 4096, 4096
      %1480 = vsyncadd [#allocation4], %s1479
      %s1481 = sshll.u32 [#allocation3], 4
      %s1482 = int_to_ptr.vmem [resolvable:$true] %s1481
      %1487 = dma.vmem_to_hbm [thread:$0]  %s1482, 4096, %s2, [#allocation4], 64, 64, 4
    $region21: #{_conv1x1_unit.1} parent=1 // pred_fallthru
      _
    // Predicated region
    $region22: #{_conv1x1_unit.1} parent=1 // pred_check
      _
    $region23: #{_conv1x1_unit.1} parent=1 // pred_check_branch
      %1489 = sbr.rel (0) target = $region25
    $region24: #{_conv1x1_unit.1} parent=1 // pred_region
      _
    $region25: #{_conv1x1_unit.1} parent=1 // pred_fallthru
      _
    // Predicated region
    $region26: #{_conv1x1_unit.1} parent=1 // pred_check
      _
    $region27: #{_conv1x1_unit.1} parent=1 // pred_check_branch
      %1491 = sbr.rel (0) target = $region29
    $region28: #{_conv1x1_unit.1} parent=1 // pred_region
      _
    $region29: #{_conv1x1_unit.1} parent=1 // pred_fallthru
      _
    // Predicated region
    $region30: #{_conv1x1_unit.1} parent=1 // pred_check
      _
    $region31: #{_conv1x1_unit.1} parent=1 // pred_check_branch
      %1493 = sbr.rel (0) target = $region33
    $region32: #{_conv1x1_unit.1} parent=1 // pred_region
      %1494 = dma.done [#allocation4], 4096
    $region33: #{_conv1x1_unit.1} parent=1 // pred_fallthru
      _
    // Predicated region
    $region34: #{_conv1x1_unit.1} parent=1 // pred_check
      _
    $region35: #{_conv1x1_unit.1} parent=1 // pred_check_branch
      %1496 = sbr.rel (0) target = $region37
    $region36: #{_conv1x1_unit.1} parent=1 // pred_region
      _
    $region37: #{_conv1x1_unit.1} parent=1 // pred_fallthru
      _
    // Predicated region
    $region38: #{_conv1x1_unit.1} parent=1 // pred_check
      _
    $region39: #{_conv1x1_unit.1} parent=1 // pred_check_branch
      %1498 = sbr.rel (0) target = $region41
    $region40: #{_conv1x1_unit.1} parent=1 // pred_region
      _
    $region41: #{_conv1x1_unit.1} parent=1 // pred_fallthru
      _
    %1499 = vsyncpa [#allocation4], 1

</llo_original>
